<compile_context>
chip_gen: v6e
topology: v6e:2x2x1
jax: 0.10.0
libtpu: 0.0.40
codegen_flags: <defaults>
</compile_context>

<pallas_src>
import numpy as np

import jax
import jax.numpy as jnp
from jax.experimental import pallas as pl
from jax.experimental.pallas import tpu as pltpu

N_FFT = 512
HOP = 100
WIN_LEN = 400
N_FREQ = N_FFT // 2            # onesided gives 257 bins; last one dropped -> 256
LEFT = (N_FFT - WIN_LEN) // 2  # 56: centered zero-padding offset of the window
N_OUT = 2 * N_FREQ             # fused [real | imag] output width = 512
N_SHIFT = WIN_LEN // HOP       # 4 shifted partial products per frame tile


def _make_fused_basis_np():
    """(WIN_LEN, 2*N_FREQ) float32: cols [0:256] = cos, [256:512] = -sin.

    Only the WIN_LEN rows where the rectangular window is 1 are kept. Angles
    are reduced mod 2*pi in float64 before cos/sin for accuracy.
    """
    n = np.arange(LEFT, LEFT + WIN_LEN, dtype=np.float64)   # sample index in frame
    k = np.arange(N_FREQ, dtype=np.float64)
    angle = 2.0 * np.pi * np.mod(np.outer(n, k) / N_FFT, 1.0)
    basis = np.concatenate([np.cos(angle), -np.sin(angle)], axis=1)
    return basis.astype(np.float32)


_FUSED_BASIS_F32 = _make_fused_basis_np()                   # (400, 512)


def _stft_kernel(a_ref, b_ref, basis_ref, out_ref, s_ref, acc_ref):
    """In-kernel framing + fused real/imag DFT matmul for one frame tile.

    a_ref:     (TM, 100)   bf16  slab rows [i*TM, i*TM + TM)
    b_ref:     (8, 100)    bf16  slab rows [i*TM + TM, i*TM + TM + 8) (overlap)
    basis_ref: (4, 100, 512) bf16  [cos | -sin] basis split along the shift q
    out_ref:   (2, TM, 256) f32   (real, imag) for frames [i*TM, i*TM + TM)
    s_ref:     (TM + 8, 100) f32  staging scratch (f32 so the shifted row
                                   slices are plain 32-bit sublane-offset loads)
    acc_ref:   (TM, 512)   f32   accumulator scratch
    """
    tm = a_ref.shape[0]
    s_ref[0:tm, :] = a_ref[...].astype(jnp.float32)
    s_ref[tm:tm + 8, :] = b_ref[...].astype(jnp.float32)
    # frames[i, 100*q + r] = slab[i + q, r]  =>  out = sum_q slab[q:q+TM] @ B_q
    for q in range(N_SHIFT):
        lhs = s_ref[pl.ds(q, tm), :].astype(jnp.bfloat16)
        part = jnp.dot(lhs, basis_ref[q], preferred_element_type=jnp.float32)
        if q == 0:
            acc_ref[...] = part
        else:
            acc_ref[...] += part
    out_ref[0] = acc_ref[:, :N_FREQ]    # real
    out_ref[1] = acc_ref[:, N_FREQ:]    # imag


def _round_up(v, m):
    return (v + m - 1) // m * m


@jax.jit
def stft_forward(x):
    """x: (B, 1, T) float -> (B, 2, n_frames, 256) float32 (real, imag)."""
    B, C, T = x.shape
    assert C == 1
    assert T > N_FFT // 2, "reflect padding requires T > n_fft // 2"

    # squeeze(1), cast to bf16 once, then center reflect-pad (PyTorch default).
    xs = x[:, 0, :].astype(jnp.bfloat16)
    pad = N_FFT // 2
    xp = jnp.pad(xs, ((0, 0), (pad, pad)), mode="reflect")  # (B, T + 512) bf16

    n_frames = T // HOP + 1
    # Large frame tiles amortize the fixed per-grid-step cost; keep >= 2 grid
    # steps when B == 1 so v7x's two TensorCores both get work.
    target_tiles = 2 if B == 1 else 1
    TM = min(1024, max(8, _round_up(pl.cdiv(n_frames, target_tiles), 8)))
    num_tiles = pl.cdiv(n_frames, TM)

    # slab[b, m, :] = xp[b, 56 + 100*m : 56 + 100*(m+1)]; frame i = rows i..i+3.
    n_rows = n_frames + (N_SHIFT - 1)
    slab = xp[:, LEFT:LEFT + n_rows * HOP].reshape(B, n_rows, HOP)
    # Zero-pad rows so every (TM) block and its 8-row overlap block stay
    # in-bounds; the pad only ever feeds masked (OOB) output frames.
    n_rows_pad = num_tiles * TM + 8
    slab = jnp.pad(slab, ((0, 0), (0, n_rows_pad - n_rows), (0, 0)))

    basis = jnp.asarray(_FUSED_BASIS_F32.reshape(N_SHIFT, HOP, N_OUT),
                        dtype=jnp.bfloat16)                 # (4, 100, 512)

    cost = pl.CostEstimate(
        flops=2 * B * num_tiles * TM * WIN_LEN * N_OUT,
        bytes_accessed=(B * n_rows_pad * HOP * 2            # slab (bf16)
                        + N_SHIFT * HOP * N_OUT * 2         # basis (bf16)
                        + B * 2 * n_frames * N_FREQ * 4),   # output (f32)
        transcendentals=0,
    )

    out = pl.pallas_call(
        _stft_kernel,
        out_shape=jax.ShapeDtypeStruct((B, 2, n_frames, N_FREQ), jnp.float32),
        grid=(B, num_tiles),
        in_specs=[
            # Main slab block for this frame tile.
            pl.BlockSpec((None, TM, HOP), lambda b, i: (b, i, 0)),
            # 8-row overlap block (rows [ (i+1)*TM, (i+1)*TM + 8 )).
            pl.BlockSpec((None, 8, HOP), lambda b, i: (b, (i + 1) * (TM // 8), 0)),
            # Constant basis: same block every step -> fetched once by Pallas.
            pl.BlockSpec((N_SHIFT, HOP, N_OUT), lambda b, i: (0, 0, 0)),
        ],
        out_specs=pl.BlockSpec((None, 2, TM, N_FREQ), lambda b, i: (b, 0, i, 0)),
        scratch_shapes=[
            pltpu.VMEM((TM + 8, HOP), jnp.float32),
            pltpu.VMEM((TM, N_OUT), jnp.float32),
        ],
        compiler_params=pltpu.CompilerParams(
            dimension_semantics=("parallel", "parallel"),
            vmem_limit_bytes=32 * 1024 * 1024,
        ),
        cost_estimate=cost,
    )(slab, slab, basis)
    return out


def _reference_stft(x, bf16_operands=False, highest=False):
    """Pure-JAX reference of the same math (f32 or bf16-rounded operands)."""
    B, _, T = x.shape
    xs = x[:, 0, :].astype(jnp.float32)
    pad = N_FFT // 2
    xp = jnp.pad(xs, ((0, 0), (pad, pad)), mode="reflect")
    F = T // HOP + 1
    idx = (jnp.arange(F) * HOP)[:, None] + (LEFT + jnp.arange(WIN_LEN))[None, :]
    frames = xp[:, idx]                                     # (B, F, 400) f32
    basis = jnp.asarray(_FUSED_BASIS_F32)                   # (400, 512) f32
    if bf16_operands:
        frames = frames.astype(jnp.bfloat16).astype(jnp.float32)
        basis = basis.astype(jnp.bfloat16).astype(jnp.float32)
    prec = jax.lax.Precision.HIGHEST if highest else None
    out = jnp.einsum("bfn,nk->bfk", frames, basis,
                     precision=prec, preferred_element_type=jnp.float32)
    return jnp.stack([out[..., :N_FREQ], out[..., N_FREQ:]], axis=1)


if __name__ == "__main__":
    # Case 1: small shape (single frame tile per batch, grid (2, 1)).
    B, T = 2, 800
    x = jax.random.normal(jax.random.PRNGKey(0), (B, 1, T), dtype=jnp.float32)
    out = jax.block_until_ready(stft_forward(x))
    n_frames = T // HOP + 1
    assert out.shape == (B, 2, n_frames, N_FREQ), out.shape

    # Tight check vs. a reference using the same bf16-rounded operands
    # (f32 accumulation in both) — only accumulation-order differences remain.
    ref_tight = _reference_stft(x, bf16_operands=True)
    assert jnp.allclose(out, ref_tight, atol=2e-2, rtol=2e-3), \
        float(jnp.max(jnp.abs(out - ref_tight)))
    # Looser check vs. a full-f32 reference (bf16 operands trade ~1e-3 rel. acc.).
    ref_f32 = _reference_stft(x, bf16_operands=False, highest=True)
    assert jnp.allclose(out, ref_f32, atol=0.35, rtol=2e-2), \
        float(jnp.max(jnp.abs(out - ref_f32)))

    # Case 2: multi-tile grid with a ragged last frame tile (3001 = 2*1024 + 953).
    B2, T2 = 1, 300000
    x2 = jax.random.normal(jax.random.PRNGKey(1), (B2, 1, T2), dtype=jnp.float32)
    out2 = jax.block_until_ready(stft_forward(x2))
    n_frames2 = T2 // HOP + 1
    assert out2.shape == (B2, 2, n_frames2, N_FREQ), out2.shape
    ref2 = _reference_stft(x2, bf16_operands=True)
    assert jnp.allclose(out2, ref2, atol=5e-2, rtol=5e-3), \
        float(jnp.max(jnp.abs(out2 - ref2)))

    print("KERNEL_OK")
</pallas_src>

<mosaic_0001>
module attributes {stable_mosaic.version = 11 : i64} {
  func.func @_stft_kernel(%arg0: i32, %arg1: i32, %arg2: memref<1x16x100xbf16, #tpu.memory_space<vmem>>, %arg3: memref<1x8x100xbf16, #tpu.memory_space<vmem>>, %arg4: memref<4x100x512xbf16, #tpu.memory_space<vmem>>, %arg5: memref<1x2x16x256xf32, #tpu.memory_space<vmem>>, %arg6: memref<24x100xf32, #tpu.memory_space<vmem>>, %arg7: memref<16x512xf32, #tpu.memory_space<vmem>>) attributes {dimension_semantics = [#tpu.dimension_semantics<parallel>, #tpu.dimension_semantics<parallel>], iteration_bounds = array<i64: 2, 1>, scalar_prefetch = 0 : i64, scratch_operands = 2 : i64, tpu.core_type = #tpu.core_type<tc>, window_params = [{transform_indices = @transform_0, window_bounds = array<i64: 1, 16, 100>}, {transform_indices = @transform_1, window_bounds = array<i64: 1, 8, 100>}, {pipeline_mode = #tpu.pipeline_mode<synchronous>, transform_indices = @transform_2, window_bounds = array<i64: 4, 100, 512>}, {transform_indices = @transform_3, window_bounds = array<i64: 1, 2, 16, 256>}]} {
    %c0 = arith.constant 0 : index
    %c0_0 = arith.constant 0 : index
    %c0_1 = arith.constant 0 : index
    %0 = vector.load %arg2[%c0, %c0_0, %c0_1] : memref<1x16x100xbf16, #tpu.memory_space<vmem>>, vector<1x16x100xbf16>
    %1 = vector.shape_cast %0 : vector<1x16x100xbf16> to vector<16x100xbf16>
    %2 = arith.extf %1 : vector<16x100xbf16> to vector<16x100xf32>
    %c0_2 = arith.constant 0 : index
    %c0_3 = arith.constant 0 : index
    %3 = vector.load %arg6[%c0_2, %c0_3] : memref<24x100xf32, #tpu.memory_space<vmem>>, vector<16x100xf32>
    tpu.vector_store %arg6[%c0_2, %c0_3], %2 {strides = array<i32>} : memref<24x100xf32, #tpu.memory_space<vmem>>, vector<16x100xf32>,
    %c0_4 = arith.constant 0 : index
    %c0_5 = arith.constant 0 : index
    %c0_6 = arith.constant 0 : index
    %4 = vector.load %arg3[%c0_4, %c0_5, %c0_6] : memref<1x8x100xbf16, #tpu.memory_space<vmem>>, vector<1x8x100xbf16>
    %5 = vector.shape_cast %4 : vector<1x8x100xbf16> to vector<8x100xbf16>
    %6 = arith.extf %5 : vector<8x100xbf16> to vector<8x100xf32>
    %c16 = arith.constant 16 : index
    %c0_7 = arith.constant 0 : index
    %7 = vector.load %arg6[%c16, %c0_7] : memref<24x100xf32, #tpu.memory_space<vmem>>, vector<8x100xf32>
    tpu.vector_store %arg6[%c16, %c0_7], %6 {strides = array<i32>} : memref<24x100xf32, #tpu.memory_space<vmem>>, vector<8x100xf32>,
    %c0_8 = arith.constant 0 : index
    %c0_9 = arith.constant 0 : index
    %8 = vector.load %arg6[%c0_8, %c0_9] : memref<24x100xf32, #tpu.memory_space<vmem>>, vector<16x100xf32>
    %9 = arith.truncf %8 : vector<16x100xf32> to vector<16x100xbf16>
    %c0_10 = arith.constant 0 : index
    %c0_11 = arith.constant 0 : index
    %c0_12 = arith.constant 0 : index
    %10 = vector.load %arg4[%c0_10, %c0_11, %c0_12] : memref<4x100x512xbf16, #tpu.memory_space<vmem>>, vector<1x100x512xbf16>
    %11 = vector.shape_cast %10 : vector<1x100x512xbf16> to vector<100x512xbf16>
    %cst = arith.constant dense<0.000000e+00> : vector<16x512xf32>
    %12 = tpu.matmul %9, %11, %cst {dimension_numbers = #tpu.dot_dimension_numbers<[1], [0], [0], [1], [0, 0, 1, 1], [], []>} : vector<16x100xbf16>, vector<100x512xbf16>, vector<16x512xf32> -> vector<16x512xf32>
    %c0_13 = arith.constant 0 : index
    %c0_14 = arith.constant 0 : index
    %13 = vector.load %arg7[%c0_13, %c0_14] : memref<16x512xf32, #tpu.memory_space<vmem>>, vector<16x512xf32>
    tpu.vector_store %arg7[%c0_13, %c0_14], %12 {strides = array<i32>} : memref<16x512xf32, #tpu.memory_space<vmem>>, vector<16x512xf32>,
    %c1 = arith.constant 1 : index
    %c0_15 = arith.constant 0 : index
    %14 = vector.load %arg6[%c1, %c0_15] : memref<24x100xf32, #tpu.memory_space<vmem>>, vector<16x100xf32>
    %15 = arith.truncf %14 : vector<16x100xf32> to vector<16x100xbf16>
    %c1_16 = arith.constant 1 : index
    %c0_17 = arith.constant 0 : index
    %c0_18 = arith.constant 0 : index
    %16 = vector.load %arg4[%c1_16, %c0_17, %c0_18] : memref<4x100x512xbf16, #tpu.memory_space<vmem>>, vector<1x100x512xbf16>
    %17 = vector.shape_cast %16 : vector<1x100x512xbf16> to vector<100x512xbf16>
    %cst_19 = arith.constant dense<0.000000e+00> : vector<16x512xf32>
    %18 = tpu.matmul %15, %17, %cst_19 {dimension_numbers = #tpu.dot_dimension_numbers<[1], [0], [0], [1], [0, 0, 1, 1], [], []>} : vector<16x100xbf16>, vector<100x512xbf16>, vector<16x512xf32> -> vector<16x512xf32>
    %c0_20 = arith.constant 0 : index
    %c0_21 = arith.constant 0 : index
    %19 = vector.load %arg7[%c0_20, %c0_21] : memref<16x512xf32, #tpu.memory_space<vmem>>, vector<16x512xf32>
    %20 = arith.addf %19, %18 : vector<16x512xf32>
    %c0_22 = arith.constant 0 : index
    %c0_23 = arith.constant 0 : index
    %21 = vector.load %arg7[%c0_22, %c0_23] : memref<16x512xf32, #tpu.memory_space<vmem>>, vector<16x512xf32>
    tpu.vector_store %arg7[%c0_22, %c0_23], %20 {strides = array<i32>} : memref<16x512xf32, #tpu.memory_space<vmem>>, vector<16x512xf32>,
    %c2 = arith.constant 2 : index
    %c0_24 = arith.constant 0 : index
    %22 = vector.load %arg6[%c2, %c0_24] : memref<24x100xf32, #tpu.memory_space<vmem>>, vector<16x100xf32>
    %23 = arith.truncf %22 : vector<16x100xf32> to vector<16x100xbf16>
    %c2_25 = arith.constant 2 : index
    %c0_26 = arith.constant 0 : index
    %c0_27 = arith.constant 0 : index
    %24 = vector.load %arg4[%c2_25, %c0_26, %c0_27] : memref<4x100x512xbf16, #tpu.memory_space<vmem>>, vector<1x100x512xbf16>
    %25 = vector.shape_cast %24 : vector<1x100x512xbf16> to vector<100x512xbf16>
    %cst_28 = arith.constant dense<0.000000e+00> : vector<16x512xf32>
    %26 = tpu.matmul %23, %25, %cst_28 {dimension_numbers = #tpu.dot_dimension_numbers<[1], [0], [0], [1], [0, 0, 1, 1], [], []>} : vector<16x100xbf16>, vector<100x512xbf16>, vector<16x512xf32> -> vector<16x512xf32>
    %c0_29 = arith.constant 0 : index
    %c0_30 = arith.constant 0 : index
    %27 = vector.load %arg7[%c0_29, %c0_30] : memref<16x512xf32, #tpu.memory_space<vmem>>, vector<16x512xf32>
    %28 = arith.addf %27, %26 : vector<16x512xf32>
    %c0_31 = arith.constant 0 : index
    %c0_32 = arith.constant 0 : index
    %29 = vector.load %arg7[%c0_31, %c0_32] : memref<16x512xf32, #tpu.memory_space<vmem>>, vector<16x512xf32>
    tpu.vector_store %arg7[%c0_31, %c0_32], %28 {strides = array<i32>} : memref<16x512xf32, #tpu.memory_space<vmem>>, vector<16x512xf32>,
    %c3 = arith.constant 3 : index
    %c0_33 = arith.constant 0 : index
    %30 = vector.load %arg6[%c3, %c0_33] : memref<24x100xf32, #tpu.memory_space<vmem>>, vector<16x100xf32>
    %31 = arith.truncf %30 : vector<16x100xf32> to vector<16x100xbf16>
    %c3_34 = arith.constant 3 : index
    %c0_35 = arith.constant 0 : index
    %c0_36 = arith.constant 0 : index
    %32 = vector.load %arg4[%c3_34, %c0_35, %c0_36] : memref<4x100x512xbf16, #tpu.memory_space<vmem>>, vector<1x100x512xbf16>
    %33 = vector.shape_cast %32 : vector<1x100x512xbf16> to vector<100x512xbf16>
    %cst_37 = arith.constant dense<0.000000e+00> : vector<16x512xf32>
    %34 = tpu.matmul %31, %33, %cst_37 {dimension_numbers = #tpu.dot_dimension_numbers<[1], [0], [0], [1], [0, 0, 1, 1], [], []>} : vector<16x100xbf16>, vector<100x512xbf16>, vector<16x512xf32> -> vector<16x512xf32>
    %c0_38 = arith.constant 0 : index
    %c0_39 = arith.constant 0 : index
    %35 = vector.load %arg7[%c0_38, %c0_39] : memref<16x512xf32, #tpu.memory_space<vmem>>, vector<16x512xf32>
    %36 = arith.addf %35, %34 : vector<16x512xf32>
    %c0_40 = arith.constant 0 : index
    %c0_41 = arith.constant 0 : index
    %37 = vector.load %arg7[%c0_40, %c0_41] : memref<16x512xf32, #tpu.memory_space<vmem>>, vector<16x512xf32>
    tpu.vector_store %arg7[%c0_40, %c0_41], %36 {strides = array<i32>} : memref<16x512xf32, #tpu.memory_space<vmem>>, vector<16x512xf32>,
    %c0_42 = arith.constant 0 : index
    %c0_43 = arith.constant 0 : index
    %38 = vector.load %arg7[%c0_42, %c0_43] : memref<16x512xf32, #tpu.memory_space<vmem>>, vector<16x256xf32>
    %c0_44 = arith.constant 0 : index
    %c0_45 = arith.constant 0 : index
    %c0_46 = arith.constant 0 : index
    %c0_47 = arith.constant 0 : index
    %39 = vector.load %arg5[%c0_44, %c0_45, %c0_46, %c0_47] : memref<1x2x16x256xf32, #tpu.memory_space<vmem>>, vector<1x1x16x256xf32>
    %40 = vector.shape_cast %39 : vector<1x1x16x256xf32> to vector<16x256xf32>
    %41 = vector.shape_cast %38 : vector<16x256xf32> to vector<1x1x16x256xf32>
    tpu.vector_store %arg5[%c0_44, %c0_45, %c0_46, %c0_47], %41 {strides = array<i32>} : memref<1x2x16x256xf32, #tpu.memory_space<vmem>>, vector<1x1x16x256xf32>,
    %c0_48 = arith.constant 0 : index
    %c256 = arith.constant 256 : index
    %42 = vector.load %arg7[%c0_48, %c256] : memref<16x512xf32, #tpu.memory_space<vmem>>, vector<16x256xf32>
    %c0_49 = arith.constant 0 : index
    %c1_50 = arith.constant 1 : index
    %c0_51 = arith.constant 0 : index
    %c0_52 = arith.constant 0 : index
    %43 = vector.load %arg5[%c0_49, %c1_50, %c0_51, %c0_52] : memref<1x2x16x256xf32, #tpu.memory_space<vmem>>, vector<1x1x16x256xf32>
    %44 = vector.shape_cast %43 : vector<1x1x16x256xf32> to vector<16x256xf32>
    %45 = vector.shape_cast %42 : vector<16x256xf32> to vector<1x1x16x256xf32>
    tpu.vector_store %arg5[%c0_49, %c1_50, %c0_51, %c0_52], %45 {strides = array<i32>} : memref<1x2x16x256xf32, #tpu.memory_space<vmem>>, vector<1x1x16x256xf32>,
    return
  }
  func.func @transform_0(%arg0: i32, %arg1: i32) -> (i32, i32, i32) {
    %c0_i32 = arith.constant 0 : i32
    %c0_i32_0 = arith.constant 0 : i32
    return %arg0, %arg1, %c0_i32 : i32, i32, i32
  }
  func.func @transform_1(%arg0: i32, %arg1: i32) -> (i32, i32, i32) {
    %c1_i32 = arith.constant 1 : i32
    %0 = arith.addi %arg1, %c1_i32 : i32
    %c2_i32 = arith.constant 2 : i32
    %1 = arith.muli %0, %c2_i32 : i32
    %c0_i32 = arith.constant 0 : i32
    %c0_i32_0 = arith.constant 0 : i32
    return %arg0, %1, %c0_i32 : i32, i32, i32
  }
  func.func @transform_2(%arg0: i32, %arg1: i32) -> (i32, i32, i32) {
    %c0_i32 = arith.constant 0 : i32
    %c0_i32_0 = arith.constant 0 : i32
    %c0_i32_1 = arith.constant 0 : i32
    %c0_i32_2 = arith.constant 0 : i32
    return %c0_i32, %c0_i32_0, %c0_i32_1 : i32, i32, i32
  }
  func.func @transform_3(%arg0: i32, %arg1: i32) -> (i32, i32, i32, i32) {
    %c0_i32 = arith.constant 0 : i32
    %c0_i32_0 = arith.constant 0 : i32
    %c0_i32_1 = arith.constant 0 : i32
    return %arg0, %c0_i32, %arg1, %c0_i32_0 : i32, i32, i32, i32
  }
}

</mosaic_0001>

<llo_original>
// kernel: stft_forward.1
$region0: #{stft_forward.1}
  #allocation0 [shape = 'u32[]', space=smem, size = 0x4, offset = 0x4, fixed_abs, tag = 'smem constant byte address 0x4 - core index']
  #allocation1 [shape = 'u32[144,128]{1,0:T(1,128)}', space=vmem, size = 0x12000, scoped, tag = 'internal scratch']
  #allocation2 [shape = 'f32[24,100]{1,0:T(8,128)}', space=vmem, size = 0x3000, scoped, tag = 'scratch operand']
  #allocation3 [shape = 'f32[16,512]{1,0:T(8,128)}', space=vmem, size = 0x8000, scoped, tag = 'scratch operand']
  %s0 = inlined_call_operand.vmem [shape: bf16[2,24,100], index: 0, kind: input, shape index: {}, may-alias: {0,1}]
  %s1 = inlined_call_operand.vmem [shape: bf16[2,24,100], index: 1, kind: input, shape index: {}, may-alias: {0,1}]
  %s2 = inlined_call_operand.hbm [shape: bf16[4,100,512], index: 2, kind: input, shape index: {}]
  %s3 = inlined_call_operand.vmem [shape: f32[2,2,9,256], index: 3, kind: output, shape index: {}]
  %s4 = sld [smem:[#allocation0]]
  $region49: #{stft_forward.1} parent=0
    _
  %s6 = ssub.s32 1, %s4
  %s7 = scalar_select 0, %s6, %s4
  $region1: #{stft_forward.1} parent=0
    #allocation4 [shape = 'u8[425984]{0}', space=vmem, size = 0x68000, scoped, tag = 'input window, operand 2, single buffered']
    #allocation5 [shape = 's32[2]{0}', space=sflag, size = 0x8, scoped, tag = 'scoped memory for stft_forward.1']
    %8 = vsyncpa [#allocation5], 0
    loop: start=0, step=1, limit=4
    $region2: #{stft_forward.1} parent=1 // loop_pre_header
      _
    $region3: #{stft_forward.1} parent=1 // loop_header
      %s10 = sphi 0, %s14
      %p11 = scmp.ge.s32.totalorder %s10, 4
      %s17 = sphi 0, %s29
      %s18 = sphi 0, %s25
      %s19 = sphi 0, %s17
      %s20 = sphi 0, %s18
      %s21 = sphi 0, %s19
      %s22 = sphi 0, %s20
      %s34 = sphi 0, %s36
      %s37 = sphi 0, %s34
      %s38 = sphi 0, %s37
      %s54 = sphi 0, %s38
      %s66 = sphi 0, %s68
      %s69 = sphi 0, %s66
      %s70 = sphi 0, %s69
      %s86 = sphi 0, %s70
      %s90 = sphi 0, %s90
      %s92 = sphi 0, %s90
      %s93 = sphi 0, %s92
      %s107 = sphi 0, %s93
      %s115 = sphi 0, %s117
      %s118 = sphi 0, %s115
      %s119 = sphi 0, %s118
      %s135 = sphi 0, %s119
    $region4: #{stft_forward.1} parent=1 // loop_header_branch
      %13 = sbr.rel (%p11) target = $region8
    $region5: #{stft_forward.1} parent=1 // loop_body
      %s15 = ssub.s32 %s10, 1
      %s16 = ssub.s32 %s10, 2
      %s23 = sadd.s32 1, %s18
      %p24 = scmp.ge.s32.totalorder %s23, 1
      %s25 = scalar_select %p24, 0, %s23
      %s26 = sadd.s32 1, %s17
      %s27 = scalar_select %p24, %s26, %s17
      %p28 = scmp.ge.s32.totalorder %s27, 2
      %s29 = scalar_select %p28, 0, %s27
      %s30 = ssub.s32 %s17, %s29
      %s31 = ssub.s32 %s18, %s25
      %s32 = sor.u32 %s30, %s31
      %p33 = scmp.eq.s32.totalorder %s32, 0
      %s35 = sadd.s32 %s34, 1
      %s36 = scalar_select %p33, %s34, %s35
      %p39 = pneg %p33
      %p40 = scmp.eq.s32.totalorder %s10, 1
      %p41 = por %p39, %p40
      %p42 = scmp.ne.s32.totalorder %s34, %s37
      %p43 = scmp.eq.s32.totalorder %s10, 0
      %p44 = por %p42, %p43
      %p45 = scmp.ne.s32.totalorder %s34, %s37
      %p46 = scmp.eq.s32.totalorder %s15, 1
      %p47 = por %p45, %p46
      %p48 = scmp.ne.s32.totalorder %s37, %s38
      %p49 = scmp.eq.s32.totalorder %s15, 0
      %p50 = por %p48, %p49
      %p51 = scmp.ne.s32.totalorder %s37, %s38
      %p52 = scmp.eq.s32.totalorder %s16, 1
      %p53 = por %p51, %p52
      %p55 = scmp.ne.s32.totalorder %s38, %s54
      %p56 = scmp.eq.s32.totalorder %s16, 0
      %p57 = por %p55, %p56
      %s58 = sadd.s32 %s18, 1
      %s59 = smul.u32 %s58, 2
      %s60 = sadd.s32 %s25, 1
      %s61 = smul.u32 %s60, 2
      %s62 = ssub.s32 %s17, %s29
      %s63 = ssub.s32 %s59, %s61
      %s64 = sor.u32 %s62, %s63
      %p65 = scmp.eq.s32.totalorder %s64, 0
      %s67 = sadd.s32 %s66, 1
      %s68 = scalar_select %p65, %s66, %s67
      %p71 = pneg %p65
      %p72 = scmp.eq.s32.totalorder %s10, 1
      %p73 = por %p71, %p72
      %p74 = scmp.ne.s32.totalorder %s66, %s69
      %p75 = scmp.eq.s32.totalorder %s10, 0
      %p76 = por %p74, %p75
      %p77 = scmp.ne.s32.totalorder %s66, %s69
      %p78 = scmp.eq.s32.totalorder %s15, 1
      %p79 = por %p77, %p78
      %p80 = scmp.ne.s32.totalorder %s69, %s70
      %p81 = scmp.eq.s32.totalorder %s15, 0
      %p82 = por %p80, %p81
      %p83 = scmp.ne.s32.totalorder %s69, %s70
      %p84 = scmp.eq.s32.totalorder %s16, 1
      %p85 = por %p83, %p84
      %p87 = scmp.ne.s32.totalorder %s70, %s86
      %p88 = scmp.eq.s32.totalorder %s16, 0
      %p89 = por %p87, %p88
      %s91 = sadd.s32 %s90, 1
      %p94 = scmp.eq.s32.totalorder %s10, 1
      %p95 = scmp.ne.s32.totalorder %s90, %s92
      %p96 = scmp.eq.s32.totalorder %s10, 0
      %p97 = por %p95, %p96
      %p98 = scmp.ne.s32.totalorder %s90, %s92
      %p99 = scmp.eq.s32.totalorder %s15, 1
      %p100 = por %p98, %p99
      %p101 = scmp.ne.s32.totalorder %s92, %s93
      %p102 = scmp.eq.s32.totalorder %s15, 0
      %p103 = por %p101, %p102
      %p104 = scmp.ne.s32.totalorder %s92, %s93
      %p105 = scmp.eq.s32.totalorder %s16, 1
      %p106 = por %p104, %p105
      %p108 = scmp.ne.s32.totalorder %s93, %s107
      %p109 = scmp.eq.s32.totalorder %s16, 0
      %p110 = por %p108, %p109
      %s111 = ssub.s32 %s17, %s29
      %s112 = ssub.s32 %s18, %s25
      %s113 = sor.u32 %s111, %s112
      %p114 = scmp.eq.s32.totalorder %s113, 0
      %s116 = sadd.s32 %s115, 1
      %s117 = scalar_select %p114, %s115, %s116
      %p120 = pneg %p114
      %p121 = scmp.eq.s32.totalorder %s10, 1
      %p122 = por %p120, %p121
      %p123 = scmp.ne.s32.totalorder %s115, %s118
      %p124 = scmp.eq.s32.totalorder %s10, 0
      %p125 = por %p123, %p124
      %p126 = scmp.ne.s32.totalorder %s115, %s118
      %p127 = scmp.eq.s32.totalorder %s15, 1
      %p128 = por %p126, %p127
      %p129 = scmp.ne.s32.totalorder %s118, %s119
      %p130 = scmp.eq.s32.totalorder %s15, 0
      %p131 = por %p129, %p130
      %p132 = scmp.ne.s32.totalorder %s118, %s119
      %p133 = scmp.eq.s32.totalorder %s16, 1
      %p134 = por %p132, %p133
      %p136 = scmp.ne.s32.totalorder %s119, %s135
      %p137 = scmp.eq.s32.totalorder %s16, 0
      %p138 = por %p136, %p137
      %p139 = scmp.le.s32.totalorder 1, %s10
      %p140 = scmp.lt.s32.totalorder %s10, 3
      %p141 = pnand %p139, %p140
      %p142 = pneg %p141
      // Predicated region
      $region9: #{stft_forward.1} parent=5 // pred_check
        _
      $region10: #{stft_forward.1} parent=5 // pred_check_branch
        %144 = sbr.rel (%p141) target = $region12
      $region11: #{stft_forward.1} parent=5 // pred_region
        %s145 = ssub.s32 %s10, 1
        // Predicated region
        $region13: #{stft_forward.1} parent=11 // pred_check
          %p146 = pneg %p103
        $region14: #{stft_forward.1} parent=11 // pred_check_branch
          %148 = sbr.rel (%p146) target = $region16
        $region15: #{stft_forward.1} parent=11 // pred_region
          %s150 = ssub.s32 13312, 13312
          %151 = vsyncadd [#allocation5], %s150
          %s152 = sshll.u32 [#allocation4], 4
          %s153 = int_to_ptr.vmem [resolvable:$true] %s152
          %158 = dma.hbm_to_vmem [thread:$0]  %s2, 13312, %s153, [#allocation5], 256, 256, 16
        $region16: #{stft_forward.1} parent=11 // pred_fallthru
          _
      $region12: #{stft_forward.1} parent=5 // pred_fallthru
        _
      %p159 = scmp.lt.s32.totalorder %s10, 2
      // Predicated region
      $region17: #{stft_forward.1} parent=5 // pred_check
        %p160 = pneg %p159
      $region18: #{stft_forward.1} parent=5 // pred_check_branch
        %162 = sbr.rel (%p160) target = $region20
      $region19: #{stft_forward.1} parent=5 // pred_region
        // Predicated region
        $region21: #{stft_forward.1} parent=19 // pred_check
          %p163 = pneg %p44
        $region22: #{stft_forward.1} parent=19 // pred_check_branch
          %165 = sbr.rel (%p163) target = $region24
        $region23: #{stft_forward.1} parent=19 // pred_region
          %s166 = smul.u32 2, %s18
          %s167 = ssub.s32 3, %s166
          %p168 = scmp.lt.s32.totalorder %s167, 2
          %s169 = scalar_select %p168, %s167, 2
          %s170 = smul.u32 64, %s169
          %p171 = scmp.lt.s32.totalorder %s17, 1
          %s172 = scalar_select %p171, %s17, 1
          %p173 = scmp.lt.s32.totalorder %s166, 2
          %s174 = scalar_select %p173, %s166, 2
          %s175 = smul.addr %s172, 3
          %s176 = sadd.s32 %s174, %s175
          %s177 = smul.addr %s176, 4
          %s178 = scalar_lea.vmem %s0, %s177
          %s179 = smul.u32 2, %s18
          %s180 = ssub.s32 3, %s179
          %p181 = scmp.lt.s32.totalorder %s180, 2
          %s182 = scalar_select %p181, %s180, 2
          %s183 = smul.u32 64, %s182
        $region24: #{stft_forward.1} parent=19 // pred_fallthru
          _
        // Predicated region
        $region25: #{stft_forward.1} parent=19 // pred_check
          %p184 = pneg %p76
        $region26: #{stft_forward.1} parent=19 // pred_check_branch
          %186 = sbr.rel (%p184) target = $region28
        $region27: #{stft_forward.1} parent=19 // pred_region
          %s187 = sadd.s32 %s18, 1
          %s188 = smul.u32 %s187, 2
          %p189 = scmp.lt.s32.totalorder %s17, 1
          %s190 = scalar_select %p189, %s17, 1
          %p191 = scmp.lt.s32.totalorder %s188, 2
          %s192 = scalar_select %p191, %s188, 2
          %s193 = smul.addr %s190, 3
          %s194 = sadd.s32 %s192, %s193
          %s195 = smul.addr %s194, 4
          %s196 = scalar_lea.vmem %s1, %s195
          %s197 = sadd.s32 %s18, 1
          %s198 = smul.u32 %s197, 2
        $region28: #{stft_forward.1} parent=19 // pred_fallthru
          _
      $region20: #{stft_forward.1} parent=5 // pred_fallthru
        _
      %p199 = scmp.le.s32.totalorder 1, %s10
      %p200 = scmp.lt.s32.totalorder %s10, 3
      %p201 = pnand %p199, %p200
      %p202 = pneg %p201
      // Predicated region
      $region29: #{stft_forward.1} parent=5 // pred_check
        _
      $region30: #{stft_forward.1} parent=5 // pred_check_branch
        %204 = sbr.rel (%p201) target = $region32
      $region31: #{stft_forward.1} parent=5 // pred_region
        %s205 = ssub.s32 %s10, 1
        // Predicated region
        $region33: #{stft_forward.1} parent=31 // pred_check
          %p206 = pneg %p103
        $region34: #{stft_forward.1} parent=31 // pred_check_branch
          %208 = sbr.rel (%p206) target = $region36
        $region35: #{stft_forward.1} parent=31 // pred_region
          %209 = dma.done [#allocation5], 13312
        $region36: #{stft_forward.1} parent=31 // pred_fallthru
          _
        %s210 = smul.u32 2, %s20
        %s211 = ssub.s32 3, %s210
        %p212 = scmp.lt.s32.totalorder %s211, 2
        %s213 = scalar_select %p212, %s211, 2
        %s214 = smul.u32 64, %s213
        %p215 = scmp.lt.s32.totalorder %s19, 1
        %s216 = scalar_select %p215, %s19, 1
        %p217 = scmp.lt.s32.totalorder %s210, 2
        %s218 = scalar_select %p217, %s210, 2
        %s219 = smul.addr %s216, 3
        %s220 = sadd.s32 %s218, %s219
        %s221 = smul.addr %s220, 4
        %s222 = scalar_lea.vmem %s0, %s221
        %p223 = pneg %p50
        %p224 = pneg %p47
        %s225 = sadd.s32 %s20, 1
        %s226 = smul.u32 %s225, 2
        %p227 = scmp.lt.s32.totalorder %s19, 1
        %s228 = scalar_select %p227, %s19, 1
        %p229 = scmp.lt.s32.totalorder %s226, 2
        %s230 = scalar_select %p229, %s226, 2
        %s231 = smul.addr %s228, 3
        %s232 = sadd.s32 %s230, %s231
        %s233 = smul.addr %s232, 4
        %s234 = scalar_lea.vmem %s1, %s233
        %p235 = pneg %p82
        %p236 = pneg %p79
        %p237 = pneg %p103
        %p238 = pneg %p100
        %p239 = pneg %p131
        %p240 = pneg %p128
        %s241 = smul.u32 2, %s20
        %p242 = scmp.lt.s32.totalorder %s19, 1
        %s243 = scalar_select %p242, %s19, 1
        %p244 = scmp.lt.s32.totalorder %s241, 1
        %s245 = scalar_select %p244, %s241, 1
        %s246 = smul.addr %s245, 2
        %s247 = smul.addr %s243, 8
        %s248 = sadd.s32 %s246, %s247
        %s249 = smul.addr %s248, 8
        %s250 = scalar_lea.vmem %s3, %s249
        %s251 = smul.u32 2, %s20
        %s252 = ssub.s32 3, %s251
        %p253 = scmp.lt.s32.totalorder %s252, 2
        %s254 = scalar_select %p253, %s252, 2
        %s255 = smul.u32 64, %s254
        %p256 = scmp.lt.s32.totalorder %s19, 1
        %s257 = scalar_select %p256, %s19, 1
        %p258 = scmp.lt.s32.totalorder %s251, 2
        %s259 = scalar_select %p258, %s251, 2
        %s260 = smul.addr %s257, 3
        %s261 = sadd.s32 %s259, %s260
        %s262 = smul.addr %s261, 4
        %s263 = scalar_lea.vmem %s0, %s262
        %s264 = smul.u32 2, %s20
        %s265 = ssub.s32 3, %s264
        %p266 = scmp.lt.s32.totalorder %s265, 2
        %s267 = scalar_select %p266, %s265, 2
        %s268 = smul.u32 64, %s267
        %s269 = sadd.s32 %s20, 1
        %s270 = smul.u32 %s269, 2
        %p271 = scmp.lt.s32.totalorder %s19, 1
        %s272 = scalar_select %p271, %s19, 1
        %p273 = scmp.lt.s32.totalorder %s270, 2
        %s274 = scalar_select %p273, %s270, 2
        %s275 = smul.addr %s272, 3
        %s276 = sadd.s32 %s274, %s275
        %s277 = smul.addr %s276, 4
        %s278 = scalar_lea.vmem %s1, %s277
        %s279 = sadd.s32 %s20, 1
        %s280 = smul.u32 %s279, 2
        %s281 = smul.u32 2, %s20
        %p282 = scmp.lt.s32.totalorder %s19, 1
        %s283 = scalar_select %p282, %s19, 1
        %p284 = scmp.lt.s32.totalorder %s281, 1
        %s285 = scalar_select %p284, %s281, 1
        %s286 = smul.addr %s285, 2
        %s287 = smul.addr %s283, 8
        %s288 = sadd.s32 %s286, %s287
        %s289 = smul.addr %s288, 8
        %s290 = scalar_lea.vmem %s3, %s289
        %s291 = smul.u32 2, %s20
        %v293 = vld [vmem:[%s263] sm:$0xf]
        %v294 = vld [vmem:[%s263 + $0x4] sm:$0xf]
        %v295 = vunpack.c.l.bf16 %v293
        %v296 = vunpack.c.l.bf16 %v294
        %vm297 = vcmask 818176
        %298 = vst.msk [vmem:[#allocation2] sm:$0xff] %vm297, %v295
        %299 = vst.msk [vmem:[#allocation2 + $0x8] sm:$0xff] %vm297, %v296
        %v300 = vld [vmem:[%s278] sm:$0xf]
        %v301 = vunpack.c.l.bf16 %v300
        %302 = vst.msk [vmem:[#allocation2 + $0x10] sm:$0xff] %vm297, %v301
        %v303 = vld [vmem:[#allocation2] sm:$0xff]
        %v304 = vld [vmem:[#allocation2 + $0x8] sm:$0xff]
        %v305 = vpack.c.bf16 %v304, %v303
        %v306 = vld [vmem:[#allocation4] sm:$0xff]
        %v307 = vld [vmem:[#allocation4 + $0x8] sm:$0xff]
        %v308 = vld [vmem:[#allocation4 + $0x10] sm:$0xff]
        %v309 = vld [vmem:[#allocation4 + $0x18] sm:$0xff]
        %v310 = vld [vmem:[#allocation4 + $0x20] sm:$0xff]
        %v311 = vld [vmem:[#allocation4 + $0x28] sm:$0xff]
        %v312 = vld [vmem:[#allocation4 + $0x30] sm:$0xff]
        %v313 = vld [vmem:[#allocation4 + $0x38] sm:$0xff]
        %v314 = vld [vmem:[#allocation4 + $0x40] sm:$0xff]
        %v315 = vld [vmem:[#allocation4 + $0x48] sm:$0xff]
        %v316 = vld [vmem:[#allocation4 + $0x50] sm:$0xff]
        %v317 = vld [vmem:[#allocation4 + $0x58] sm:$0xff]
        %v318 = vld [vmem:[#allocation4 + $0x60] sm:$0xff]
        %v319 = vld [vmem:[#allocation4 + $0x68] sm:$0xff]
        %v320 = vld [vmem:[#allocation4 + $0x70] sm:$0xff]
        %v321 = vld [vmem:[#allocation4 + $0x78] sm:$0xff]
        %v322 = vld [vmem:[#allocation4 + $0x80] sm:$0xff]
        %v323 = vld [vmem:[#allocation4 + $0x88] sm:$0xff]
        %v324 = vld [vmem:[#allocation4 + $0x90] sm:$0xff]
        %v325 = vld [vmem:[#allocation4 + $0x98] sm:$0xff]
        %v326 = vld [vmem:[#allocation4 + $0xa0] sm:$0xff]
        %v327 = vld [vmem:[#allocation4 + $0xa8] sm:$0xff]
        %v328 = vld [vmem:[#allocation4 + $0xb0] sm:$0xff]
        %v329 = vld [vmem:[#allocation4 + $0xb8] sm:$0xff]
        %v330 = vld [vmem:[#allocation4 + $0xc0] sm:$0x33]
        %v331 = vld [vmem:[#allocation4 + $0xc8] sm:$0x33]
        %v358 = vunpack.c.l.b16 %v306
        %v359 = vunpack.c.h.b16 %v306
        %v360 = vunpack.c.l.b16 %v307
        %v361 = vunpack.c.h.b16 %v307
        %v362 = vunpack.c.l.b16 %v308
        %v363 = vunpack.c.h.b16 %v308
        %v364 = vunpack.c.l.b16 %v309
        %v365 = vunpack.c.h.b16 %v309
        %v366 = vunpack.c.l.b16 %v310
        %v367 = vunpack.c.h.b16 %v310
        %v368 = vunpack.c.l.b16 %v311
        %v369 = vunpack.c.h.b16 %v311
        %v370 = vunpack.c.l.b16 %v312
        %v371 = vunpack.c.h.b16 %v312
        %v372 = vunpack.c.l.b16 %v313
        %v373 = vunpack.c.h.b16 %v313
        %v374 = vunpack.c.l.b16 %v314
        %v375 = vunpack.c.h.b16 %v314
        %v376 = vunpack.c.l.b16 %v315
        %v377 = vunpack.c.h.b16 %v315
        %v378 = vunpack.c.l.b16 %v316
        %v379 = vunpack.c.h.b16 %v316
        %v380 = vunpack.c.l.b16 %v317
        %v381 = vunpack.c.h.b16 %v317
        %v382 = vunpack.c.l.b16 %v318
        %v383 = vunpack.c.h.b16 %v318
        %v384 = vunpack.c.l.b16 %v319
        %v385 = vunpack.c.h.b16 %v319
        %v386 = vunpack.c.l.b16 %v320
        %v387 = vunpack.c.h.b16 %v320
        %v388 = vunpack.c.l.b16 %v321
        %v389 = vunpack.c.h.b16 %v321
        %v390 = vunpack.c.l.b16 %v322
        %v391 = vunpack.c.h.b16 %v322
        %v392 = vunpack.c.l.b16 %v323
        %v393 = vunpack.c.h.b16 %v323
        %v394 = vunpack.c.l.b16 %v324
        %v395 = vunpack.c.h.b16 %v324
        %v396 = vunpack.c.l.b16 %v325
        %v397 = vunpack.c.h.b16 %v325
        %v398 = vunpack.c.l.b16 %v326
        %v399 = vunpack.c.h.b16 %v326
        %v400 = vunpack.c.l.b16 %v327
        %v401 = vunpack.c.h.b16 %v327
        %v402 = vunpack.c.l.b16 %v328
        %v403 = vunpack.c.h.b16 %v328
        %v404 = vunpack.c.l.b16 %v329
        %v405 = vunpack.c.h.b16 %v329
        %v406 = vunpack.c.l.b16 %v330
        %v407 = vunpack.c.h.b16 %v330
        %v408 = vunpack.c.l.b16 %v331
        %v409 = vunpack.c.h.b16 %v331
        %v410 = vpack.c.b16 %v362, %v358
        %v411 = vpack.c.b16 %v363, %v359
        %v412 = vpack.c.b16 %v364, %v360
        %v413 = vpack.c.b16 %v365, %v361
        %v414 = vpack.c.b16 %v370, %v366
        %v415 = vpack.c.b16 %v371, %v367
        %v416 = vpack.c.b16 %v372, %v368
        %v417 = vpack.c.b16 %v373, %v369
        %v418 = vpack.c.b16 %v378, %v374
        %v419 = vpack.c.b16 %v379, %v375
        %v420 = vpack.c.b16 %v380, %v376
        %v421 = vpack.c.b16 %v381, %v377
        %v422 = vpack.c.b16 %v386, %v382
        %v423 = vpack.c.b16 %v387, %v383
        %v424 = vpack.c.b16 %v388, %v384
        %v425 = vpack.c.b16 %v389, %v385
        %v426 = vpack.c.b16 %v394, %v390
        %v427 = vpack.c.b16 %v395, %v391
        %v428 = vpack.c.b16 %v396, %v392
        %v429 = vpack.c.b16 %v397, %v393
        %v430 = vpack.c.b16 %v402, %v398
        %v431 = vpack.c.b16 %v403, %v399
        %v432 = vpack.c.b16 %v404, %v400
        %v433 = vpack.c.b16 %v405, %v401
        %v434 = vpack.c.b16 %v406, %v406
        %v435 = vpack.c.b16 %v407, %v407
        %v436 = vpack.c.b16 %v408, %v408
        %v437 = vpack.c.b16 %v409, %v409
        %v463 = vsel %vm297, %v305, 0
        %vm465 = vcmask 1041408
        %v467 = vsel %vm465, %v434, 0
        %v470 = vsel %vm465, %v435, 0
        %v473 = vsel %vm465, %v436, 0
        %v476 = vsel %vm465, %v437, 0
        %478 = vmatprep.subr.bf16.mxu0 0
        %479 = vmatpush1.bf16.msra.mxu0 0
        %480 = vmatprep.subr.bf16.mxu0 %v470
        %481 = vmatpush1.bf16.msra.mxu0 %v467
        %482 = vmatprep.subr.bf16.mxu0 %v431
        %483 = vmatpush1.bf16.msra.mxu0 %v430
        %484 = vmatprep.subr.bf16.mxu0 %v427
        %485 = vmatpush1.bf16.msra.mxu0 %v426
        %486 = vmatprep.subr.bf16.mxu0 %v423
        %487 = vmatpush1.bf16.msra.mxu0 %v422
        %488 = vmatprep.subr.bf16.mxu0 %v419
        %489 = vmatpush1.bf16.msra.mxu0 %v418
        %490 = vmatprep.subr.bf16.mxu0 %v415
        %491 = vmatpush1.bf16.msra.mxu0 %v414
        %492 = vmatprep.subr.bf16.mxu0 %v411
        %493 = vmatpush1.bf16.msra.mxu0 %v410
        %494 = vmatprep.subr.bf16.mxu0 0
        %495 = vmatpush2.bf16.msra.mxu0 0
        %496 = vmatprep.subr.bf16.mxu0 0
        %497 = vmatpush2.bf16.msra.mxu0 0
        %498 = vmatprep.subr.bf16.mxu0 0
        %499 = vmatpush2.bf16.msra.mxu0 0
        %500 = vmatprep.subr.bf16.mxu0 0
        %501 = vmatpush2.bf16.msra.mxu0 0
        %502 = vmatprep.subr.bf16.mxu0 0
        %503 = vmatpush2.bf16.msra.mxu0 0
        %504 = vmatprep.subr.bf16.mxu0 0
        %505 = vmatpush2.bf16.msra.mxu0 0
        %506 = vmatprep.subr.bf16.mxu0 0
        %507 = vmatpush2.bf16.msra.mxu0 0
        %508 = vmatprep.subr.bf16.mxu0 0
        %509 = vmatpush2.bf16.msra.mxu0 0
        %510 = vmatprep.mubr.bf16.mxu0 0
        %511 = vmatmul.mubr.bf16.gmra.mxu0 %v463
        %v512 = vpop.f32.mrf.mxu0
        %v513 = vadd.f32 0.0, %v512
        %v514 = vpop.f32.mrf.mxu0
        %v515 = vadd.f32 0.0, %v514
        %v516 = vpop.f32.mrf.mxu0
        %v517 = vadd.f32 0.0, %v516
        %v518 = vpop.f32.mrf.mxu0
        %v519 = vadd.f32 0.0, %v518
        %520 = vdwg.mxu0
        %521 = vmatprep.subr.bf16.mxu0 0
        %522 = vmatpush1.bf16.msra.mxu0 0
        %523 = vmatprep.subr.bf16.mxu0 %v476
        %524 = vmatpush1.bf16.msra.mxu0 %v473
        %525 = vmatprep.subr.bf16.mxu0 %v433
        %526 = vmatpush1.bf16.msra.mxu0 %v432
        %527 = vmatprep.subr.bf16.mxu0 %v429
        %528 = vmatpush1.bf16.msra.mxu0 %v428
        %529 = vmatprep.subr.bf16.mxu0 %v425
        %530 = vmatpush1.bf16.msra.mxu0 %v424
        %531 = vmatprep.subr.bf16.mxu0 %v421
        %532 = vmatpush1.bf16.msra.mxu0 %v420
        %533 = vmatprep.subr.bf16.mxu0 %v417
        %534 = vmatpush1.bf16.msra.mxu0 %v416
        %535 = vmatprep.subr.bf16.mxu0 %v413
        %536 = vmatpush1.bf16.msra.mxu0 %v412
        %537 = vmatprep.subr.bf16.mxu0 0
        %538 = vmatpush2.bf16.msra.mxu0 0
        %539 = vmatprep.subr.bf16.mxu0 0
        %540 = vmatpush2.bf16.msra.mxu0 0
        %541 = vmatprep.subr.bf16.mxu0 0
        %542 = vmatpush2.bf16.msra.mxu0 0
        %543 = vmatprep.subr.bf16.mxu0 0
        %544 = vmatpush2.bf16.msra.mxu0 0
        %545 = vmatprep.subr.bf16.mxu0 0
        %546 = vmatpush2.bf16.msra.mxu0 0
        %547 = vmatprep.subr.bf16.mxu0 0
        %548 = vmatpush2.bf16.msra.mxu0 0
        %549 = vmatprep.subr.bf16.mxu0 0
        %550 = vmatpush2.bf16.msra.mxu0 0
        %551 = vmatprep.subr.bf16.mxu0 0
        %552 = vmatpush2.bf16.msra.mxu0 0
        %553 = vmatprep.mubr.bf16.mxu0 0
        %554 = vmatmul.mubr.bf16.gmra.mxu0 %v463
        %v555 = vpop.f32.mrf.mxu0
        %v556 = vadd.f32 0.0, %v555
        %v557 = vpop.f32.mrf.mxu0
        %v558 = vadd.f32 0.0, %v557
        %v559 = vpop.f32.mrf.mxu0
        %v560 = vadd.f32 0.0, %v559
        %v561 = vpop.f32.mrf.mxu0
        %v562 = vadd.f32 0.0, %v561
        %563 = vdwg.mxu0
        %564 = vst [vmem:[#allocation3] sm:$0xff] %v513
        %565 = vst [vmem:[#allocation3 + $0x8] sm:$0xff] %v515
        %566 = vst [vmem:[#allocation3 + $0x10] sm:$0xff] %v556
        %567 = vst [vmem:[#allocation3 + $0x18] sm:$0xff] %v558
        %568 = vst [vmem:[#allocation3 + $0x20] sm:$0xff] %v517
        %569 = vst [vmem:[#allocation3 + $0x28] sm:$0xff] %v519
        %570 = vst [vmem:[#allocation3 + $0x30] sm:$0xff] %v560
        %571 = vst [vmem:[#allocation3 + $0x38] sm:$0xff] %v562
        %v572 = vld [vmem:[#allocation2 + $0x1] sm:$0xff]
        %v573 = vld [vmem:[#allocation2 + $0x9] sm:$0xff]
        %v574 = vpack.c.bf16 %v573, %v572
        %s575 = scalar_lea.vmem [#allocation4], 208
        %v576 = vld [vmem:[%s575] sm:$0xff]
        %v577 = vld [vmem:[%s575 + $0x8] sm:$0xff]
        %v578 = vld [vmem:[%s575 + $0x10] sm:$0xff]
        %v579 = vld [vmem:[%s575 + $0x18] sm:$0xff]
        %v580 = vld [vmem:[%s575 + $0x20] sm:$0xff]
        %v581 = vld [vmem:[%s575 + $0x28] sm:$0xff]
        %v582 = vld [vmem:[%s575 + $0x30] sm:$0xff]
        %v583 = vld [vmem:[%s575 + $0x38] sm:$0xff]
        %v584 = vld [vmem:[%s575 + $0x40] sm:$0xff]
        %v585 = vld [vmem:[%s575 + $0x48] sm:$0xff]
        %v586 = vld [vmem:[%s575 + $0x50] sm:$0xff]
        %v587 = vld [vmem:[%s575 + $0x58] sm:$0xff]
        %v588 = vld [vmem:[%s575 + $0x60] sm:$0xff]
        %v589 = vld [vmem:[%s575 + $0x68] sm:$0xff]
        %v590 = vld [vmem:[%s575 + $0x70] sm:$0xff]
        %v591 = vld [vmem:[%s575 + $0x78] sm:$0xff]
        %v592 = vld [vmem:[%s575 + $0x80] sm:$0xff]
        %v593 = vld [vmem:[%s575 + $0x88] sm:$0xff]
        %v594 = vld [vmem:[%s575 + $0x90] sm:$0xff]
        %v595 = vld [vmem:[%s575 + $0x98] sm:$0xff]
        %v596 = vld [vmem:[%s575 + $0xa0] sm:$0xff]
        %v597 = vld [vmem:[%s575 + $0xa8] sm:$0xff]
        %v598 = vld [vmem:[%s575 + $0xb0] sm:$0xff]
        %v599 = vld [vmem:[%s575 + $0xb8] sm:$0xff]
        %v600 = vld [vmem:[%s575 + $0xc0] sm:$0x33]
        %v601 = vld [vmem:[%s575 + $0xc8] sm:$0x33]
        %v628 = vunpack.c.l.b16 %v576
        %v629 = vunpack.c.h.b16 %v576
        %v630 = vunpack.c.l.b16 %v577
        %v631 = vunpack.c.h.b16 %v577
        %v632 = vunpack.c.l.b16 %v578
        %v633 = vunpack.c.h.b16 %v578
        %v634 = vunpack.c.l.b16 %v579
        %v635 = vunpack.c.h.b16 %v579
        %v636 = vunpack.c.l.b16 %v580
        %v637 = vunpack.c.h.b16 %v580
        %v638 = vunpack.c.l.b16 %v581
        %v639 = vunpack.c.h.b16 %v581
        %v640 = vunpack.c.l.b16 %v582
        %v641 = vunpack.c.h.b16 %v582
        %v642 = vunpack.c.l.b16 %v583
        %v643 = vunpack.c.h.b16 %v583
        %v644 = vunpack.c.l.b16 %v584
        %v645 = vunpack.c.h.b16 %v584
        %v646 = vunpack.c.l.b16 %v585
        %v647 = vunpack.c.h.b16 %v585
        %v648 = vunpack.c.l.b16 %v586
        %v649 = vunpack.c.h.b16 %v586
        %v650 = vunpack.c.l.b16 %v587
        %v651 = vunpack.c.h.b16 %v587
        %v652 = vunpack.c.l.b16 %v588
        %v653 = vunpack.c.h.b16 %v588
        %v654 = vunpack.c.l.b16 %v589
        %v655 = vunpack.c.h.b16 %v589
        %v656 = vunpack.c.l.b16 %v590
        %v657 = vunpack.c.h.b16 %v590
        %v658 = vunpack.c.l.b16 %v591
        %v659 = vunpack.c.h.b16 %v591
        %v660 = vunpack.c.l.b16 %v592
        %v661 = vunpack.c.h.b16 %v592
        %v662 = vunpack.c.l.b16 %v593
        %v663 = vunpack.c.h.b16 %v593
        %v664 = vunpack.c.l.b16 %v594
        %v665 = vunpack.c.h.b16 %v594
        %v666 = vunpack.c.l.b16 %v595
        %v667 = vunpack.c.h.b16 %v595
        %v668 = vunpack.c.l.b16 %v596
        %v669 = vunpack.c.h.b16 %v596
        %v670 = vunpack.c.l.b16 %v597
        %v671 = vunpack.c.h.b16 %v597
        %v672 = vunpack.c.l.b16 %v598
        %v673 = vunpack.c.h.b16 %v598
        %v674 = vunpack.c.l.b16 %v599
        %v675 = vunpack.c.h.b16 %v599
        %v676 = vunpack.c.l.b16 %v600
        %v677 = vunpack.c.h.b16 %v600
        %v678 = vunpack.c.l.b16 %v601
        %v679 = vunpack.c.h.b16 %v601
        %v680 = vpack.c.b16 %v632, %v628
        %v681 = vpack.c.b16 %v633, %v629
        %v682 = vpack.c.b16 %v634, %v630
        %v683 = vpack.c.b16 %v635, %v631
        %v684 = vpack.c.b16 %v640, %v636
        %v685 = vpack.c.b16 %v641, %v637
        %v686 = vpack.c.b16 %v642, %v638
        %v687 = vpack.c.b16 %v643, %v639
        %v688 = vpack.c.b16 %v648, %v644
        %v689 = vpack.c.b16 %v649, %v645
        %v690 = vpack.c.b16 %v650, %v646
        %v691 = vpack.c.b16 %v651, %v647
        %v692 = vpack.c.b16 %v656, %v652
        %v693 = vpack.c.b16 %v657, %v653
        %v694 = vpack.c.b16 %v658, %v654
        %v695 = vpack.c.b16 %v659, %v655
        %v696 = vpack.c.b16 %v664, %v660
        %v697 = vpack.c.b16 %v665, %v661
        %v698 = vpack.c.b16 %v666, %v662
        %v699 = vpack.c.b16 %v667, %v663
        %v700 = vpack.c.b16 %v672, %v668
        %v701 = vpack.c.b16 %v673, %v669
        %v702 = vpack.c.b16 %v674, %v670
        %v703 = vpack.c.b16 %v675, %v671
        %v704 = vpack.c.b16 %v676, %v676
        %v705 = vpack.c.b16 %v677, %v677
        %v706 = vpack.c.b16 %v678, %v678
        %v707 = vpack.c.b16 %v679, %v679
        %v733 = vsel %vm297, %v574, 0
        %v736 = vsel %vm465, %v704, 0
        %v739 = vsel %vm465, %v705, 0
        %v742 = vsel %vm465, %v706, 0
        %v745 = vsel %vm465, %v707, 0
        %747 = vmatprep.subr.bf16.mxu0 0
        %748 = vmatpush1.bf16.msra.mxu0 0
        %749 = vmatprep.subr.bf16.mxu0 %v739
        %750 = vmatpush1.bf16.msra.mxu0 %v736
        %751 = vmatprep.subr.bf16.mxu0 %v701
        %752 = vmatpush1.bf16.msra.mxu0 %v700
        %753 = vmatprep.subr.bf16.mxu0 %v697
        %754 = vmatpush1.bf16.msra.mxu0 %v696
        %755 = vmatprep.subr.bf16.mxu0 %v693
        %756 = vmatpush1.bf16.msra.mxu0 %v692
        %757 = vmatprep.subr.bf16.mxu0 %v689
        %758 = vmatpush1.bf16.msra.mxu0 %v688
        %759 = vmatprep.subr.bf16.mxu0 %v685
        %760 = vmatpush1.bf16.msra.mxu0 %v684
        %761 = vmatprep.subr.bf16.mxu0 %v681
        %762 = vmatpush1.bf16.msra.mxu0 %v680
        %763 = vmatprep.subr.bf16.mxu0 0
        %764 = vmatpush2.bf16.msra.mxu0 0
        %765 = vmatprep.subr.bf16.mxu0 0
        %766 = vmatpush2.bf16.msra.mxu0 0
        %767 = vmatprep.subr.bf16.mxu0 0
        %768 = vmatpush2.bf16.msra.mxu0 0
        %769 = vmatprep.subr.bf16.mxu0 0
        %770 = vmatpush2.bf16.msra.mxu0 0
        %771 = vmatprep.subr.bf16.mxu0 0
        %772 = vmatpush2.bf16.msra.mxu0 0
        %773 = vmatprep.subr.bf16.mxu0 0
        %774 = vmatpush2.bf16.msra.mxu0 0
        %775 = vmatprep.subr.bf16.mxu0 0
        %776 = vmatpush2.bf16.msra.mxu0 0
        %777 = vmatprep.subr.bf16.mxu0 0
        %778 = vmatpush2.bf16.msra.mxu0 0
        %779 = vmatprep.mubr.bf16.mxu0 0
        %780 = vmatmul.mubr.bf16.gmra.mxu0 %v733
        %v781 = vpop.f32.mrf.mxu0
        %v782 = vadd.f32 0.0, %v781
        %v783 = vpop.f32.mrf.mxu0
        %v784 = vadd.f32 0.0, %v783
        %v785 = vpop.f32.mrf.mxu0
        %v786 = vadd.f32 0.0, %v785
        %v787 = vpop.f32.mrf.mxu0
        %v788 = vadd.f32 0.0, %v787
        %789 = vdwg.mxu0
        %790 = vmatprep.subr.bf16.mxu0 0
        %791 = vmatpush1.bf16.msra.mxu0 0
        %792 = vmatprep.subr.bf16.mxu0 %v745
        %793 = vmatpush1.bf16.msra.mxu0 %v742
        %794 = vmatprep.subr.bf16.mxu0 %v703
        %795 = vmatpush1.bf16.msra.mxu0 %v702
        %796 = vmatprep.subr.bf16.mxu0 %v699
        %797 = vmatpush1.bf16.msra.mxu0 %v698
        %798 = vmatprep.subr.bf16.mxu0 %v695
        %799 = vmatpush1.bf16.msra.mxu0 %v694
        %800 = vmatprep.subr.bf16.mxu0 %v691
        %801 = vmatpush1.bf16.msra.mxu0 %v690
        %802 = vmatprep.subr.bf16.mxu0 %v687
        %803 = vmatpush1.bf16.msra.mxu0 %v686
        %804 = vmatprep.subr.bf16.mxu0 %v683
        %805 = vmatpush1.bf16.msra.mxu0 %v682
        %806 = vmatprep.subr.bf16.mxu0 0
        %807 = vmatpush2.bf16.msra.mxu0 0
        %808 = vmatprep.subr.bf16.mxu0 0
        %809 = vmatpush2.bf16.msra.mxu0 0
        %810 = vmatprep.subr.bf16.mxu0 0
        %811 = vmatpush2.bf16.msra.mxu0 0
        %812 = vmatprep.subr.bf16.mxu0 0
        %813 = vmatpush2.bf16.msra.mxu0 0
        %814 = vmatprep.subr.bf16.mxu0 0
        %815 = vmatpush2.bf16.msra.mxu0 0
        %816 = vmatprep.subr.bf16.mxu0 0
        %817 = vmatpush2.bf16.msra.mxu0 0
        %818 = vmatprep.subr.bf16.mxu0 0
        %819 = vmatpush2.bf16.msra.mxu0 0
        %820 = vmatprep.subr.bf16.mxu0 0
        %821 = vmatpush2.bf16.msra.mxu0 0
        %822 = vmatprep.mubr.bf16.mxu0 0
        %823 = vmatmul.mubr.bf16.gmra.mxu0 %v733
        %v824 = vpop.f32.mrf.mxu0
        %v825 = vadd.f32 0.0, %v824
        %v826 = vpop.f32.mrf.mxu0
        %v827 = vadd.f32 0.0, %v826
        %v828 = vpop.f32.mrf.mxu0
        %v829 = vadd.f32 0.0, %v828
        %v830 = vpop.f32.mrf.mxu0
        %v831 = vadd.f32 0.0, %v830
        %832 = vdwg.mxu0
        %v833 = vld [vmem:[#allocation3] sm:$0xff]
        %v834 = vld [vmem:[#allocation3 + $0x8] sm:$0xff]
        %v835 = vld [vmem:[#allocation3 + $0x10] sm:$0xff]
        %v836 = vld [vmem:[#allocation3 + $0x18] sm:$0xff]
        %v837 = vld [vmem:[#allocation3 + $0x20] sm:$0xff]
        %v838 = vld [vmem:[#allocation3 + $0x28] sm:$0xff]
        %v839 = vld [vmem:[#allocation3 + $0x30] sm:$0xff]
        %v840 = vld [vmem:[#allocation3 + $0x38] sm:$0xff]
        %v841 = vadd.f32 %v833, %v782
        %v842 = vadd.f32 %v834, %v784
        %v843 = vadd.f32 %v835, %v825
        %v844 = vadd.f32 %v836, %v827
        %v845 = vadd.f32 %v837, %v786
        %v846 = vadd.f32 %v838, %v788
        %v847 = vadd.f32 %v839, %v829
        %v848 = vadd.f32 %v840, %v831
        %849 = vst [vmem:[#allocation3] sm:$0xff] %v841
        %850 = vst [vmem:[#allocation3 + $0x8] sm:$0xff] %v842
        %851 = vst [vmem:[#allocation3 + $0x10] sm:$0xff] %v843
        %852 = vst [vmem:[#allocation3 + $0x18] sm:$0xff] %v844
        %853 = vst [vmem:[#allocation3 + $0x20] sm:$0xff] %v845
        %854 = vst [vmem:[#allocation3 + $0x28] sm:$0xff] %v846
        %855 = vst [vmem:[#allocation3 + $0x30] sm:$0xff] %v847
        %856 = vst [vmem:[#allocation3 + $0x38] sm:$0xff] %v848
        %v857 = vld [vmem:[#allocation2 + $0x2] sm:$0xff]
        %v858 = vld [vmem:[#allocation2 + $0xa] sm:$0xff]
        %v859 = vpack.c.bf16 %v858, %v857
        %s860 = scalar_lea.vmem [#allocation4], 416
        %v861 = vld [vmem:[%s860] sm:$0xff]
        %v862 = vld [vmem:[%s860 + $0x8] sm:$0xff]
        %v863 = vld [vmem:[%s860 + $0x10] sm:$0xff]
        %v864 = vld [vmem:[%s860 + $0x18] sm:$0xff]
        %v865 = vld [vmem:[%s860 + $0x20] sm:$0xff]
        %v866 = vld [vmem:[%s860 + $0x28] sm:$0xff]
        %v867 = vld [vmem:[%s860 + $0x30] sm:$0xff]
        %v868 = vld [vmem:[%s860 + $0x38] sm:$0xff]
        %v869 = vld [vmem:[%s860 + $0x40] sm:$0xff]
        %v870 = vld [vmem:[%s860 + $0x48] sm:$0xff]
        %v871 = vld [vmem:[%s860 + $0x50] sm:$0xff]
        %v872 = vld [vmem:[%s860 + $0x58] sm:$0xff]
        %v873 = vld [vmem:[%s860 + $0x60] sm:$0xff]
        %v874 = vld [vmem:[%s860 + $0x68] sm:$0xff]
        %v875 = vld [vmem:[%s860 + $0x70] sm:$0xff]
        %v876 = vld [vmem:[%s860 + $0x78] sm:$0xff]
        %v877 = vld [vmem:[%s860 + $0x80] sm:$0xff]
        %v878 = vld [vmem:[%s860 + $0x88] sm:$0xff]
        %v879 = vld [vmem:[%s860 + $0x90] sm:$0xff]
        %v880 = vld [vmem:[%s860 + $0x98] sm:$0xff]
        %v881 = vld [vmem:[%s860 + $0xa0] sm:$0xff]
        %v882 = vld [vmem:[%s860 + $0xa8] sm:$0xff]
        %v883 = vld [vmem:[%s860 + $0xb0] sm:$0xff]
        %v884 = vld [vmem:[%s860 + $0xb8] sm:$0xff]
        %v885 = vld [vmem:[%s860 + $0xc0] sm:$0x33]
        %v886 = vld [vmem:[%s860 + $0xc8] sm:$0x33]
        %v913 = vunpack.c.l.b16 %v861
        %v914 = vunpack.c.h.b16 %v861
        %v915 = vunpack.c.l.b16 %v862
        %v916 = vunpack.c.h.b16 %v862
        %v917 = vunpack.c.l.b16 %v863
        %v918 = vunpack.c.h.b16 %v863
        %v919 = vunpack.c.l.b16 %v864
        %v920 = vunpack.c.h.b16 %v864
        %v921 = vunpack.c.l.b16 %v865
        %v922 = vunpack.c.h.b16 %v865
        %v923 = vunpack.c.l.b16 %v866
        %v924 = vunpack.c.h.b16 %v866
        %v925 = vunpack.c.l.b16 %v867
        %v926 = vunpack.c.h.b16 %v867
        %v927 = vunpack.c.l.b16 %v868
        %v928 = vunpack.c.h.b16 %v868
        %v929 = vunpack.c.l.b16 %v869
        %v930 = vunpack.c.h.b16 %v869
        %v931 = vunpack.c.l.b16 %v870
        %v932 = vunpack.c.h.b16 %v870
        %v933 = vunpack.c.l.b16 %v871
        %v934 = vunpack.c.h.b16 %v871
        %v935 = vunpack.c.l.b16 %v872
        %v936 = vunpack.c.h.b16 %v872
        %v937 = vunpack.c.l.b16 %v873
        %v938 = vunpack.c.h.b16 %v873
        %v939 = vunpack.c.l.b16 %v874
        %v940 = vunpack.c.h.b16 %v874
        %v941 = vunpack.c.l.b16 %v875
        %v942 = vunpack.c.h.b16 %v875
        %v943 = vunpack.c.l.b16 %v876
        %v944 = vunpack.c.h.b16 %v876
        %v945 = vunpack.c.l.b16 %v877
        %v946 = vunpack.c.h.b16 %v877
        %v947 = vunpack.c.l.b16 %v878
        %v948 = vunpack.c.h.b16 %v878
        %v949 = vunpack.c.l.b16 %v879
        %v950 = vunpack.c.h.b16 %v879
        %v951 = vunpack.c.l.b16 %v880
        %v952 = vunpack.c.h.b16 %v880
        %v953 = vunpack.c.l.b16 %v881
        %v954 = vunpack.c.h.b16 %v881
        %v955 = vunpack.c.l.b16 %v882
        %v956 = vunpack.c.h.b16 %v882
        %v957 = vunpack.c.l.b16 %v883
        %v958 = vunpack.c.h.b16 %v883
        %v959 = vunpack.c.l.b16 %v884
        %v960 = vunpack.c.h.b16 %v884
        %v961 = vunpack.c.l.b16 %v885
        %v962 = vunpack.c.h.b16 %v885
        %v963 = vunpack.c.l.b16 %v886
        %v964 = vunpack.c.h.b16 %v886
        %v965 = vpack.c.b16 %v917, %v913
        %v966 = vpack.c.b16 %v918, %v914
        %v967 = vpack.c.b16 %v919, %v915
        %v968 = vpack.c.b16 %v920, %v916
        %v969 = vpack.c.b16 %v925, %v921
        %v970 = vpack.c.b16 %v926, %v922
        %v971 = vpack.c.b16 %v927, %v923
        %v972 = vpack.c.b16 %v928, %v924
        %v973 = vpack.c.b16 %v933, %v929
        %v974 = vpack.c.b16 %v934, %v930
        %v975 = vpack.c.b16 %v935, %v931
        %v976 = vpack.c.b16 %v936, %v932
        %v977 = vpack.c.b16 %v941, %v937
        %v978 = vpack.c.b16 %v942, %v938
        %v979 = vpack.c.b16 %v943, %v939
        %v980 = vpack.c.b16 %v944, %v940
        %v981 = vpack.c.b16 %v949, %v945
        %v982 = vpack.c.b16 %v950, %v946
        %v983 = vpack.c.b16 %v951, %v947
        %v984 = vpack.c.b16 %v952, %v948
        %v985 = vpack.c.b16 %v957, %v953
        %v986 = vpack.c.b16 %v958, %v954
        %v987 = vpack.c.b16 %v959, %v955
        %v988 = vpack.c.b16 %v960, %v956
        %v989 = vpack.c.b16 %v961, %v961
        %v990 = vpack.c.b16 %v962, %v962
        %v991 = vpack.c.b16 %v963, %v963
        %v992 = vpack.c.b16 %v964, %v964
        %v1018 = vsel %vm297, %v859, 0
        %v1021 = vsel %vm465, %v989, 0
        %v1024 = vsel %vm465, %v990, 0
        %v1027 = vsel %vm465, %v991, 0
        %v1030 = vsel %vm465, %v992, 0
        %1032 = vmatprep.subr.bf16.mxu0 0
        %1033 = vmatpush1.bf16.msra.mxu0 0
        %1034 = vmatprep.subr.bf16.mxu0 %v1024
        %1035 = vmatpush1.bf16.msra.mxu0 %v1021
        %1036 = vmatprep.subr.bf16.mxu0 %v986
        %1037 = vmatpush1.bf16.msra.mxu0 %v985
        %1038 = vmatprep.subr.bf16.mxu0 %v982
        %1039 = vmatpush1.bf16.msra.mxu0 %v981
        %1040 = vmatprep.subr.bf16.mxu0 %v978
        %1041 = vmatpush1.bf16.msra.mxu0 %v977
        %1042 = vmatprep.subr.bf16.mxu0 %v974
        %1043 = vmatpush1.bf16.msra.mxu0 %v973
        %1044 = vmatprep.subr.bf16.mxu0 %v970
        %1045 = vmatpush1.bf16.msra.mxu0 %v969
        %1046 = vmatprep.subr.bf16.mxu0 %v966
        %1047 = vmatpush1.bf16.msra.mxu0 %v965
        %1048 = vmatprep.subr.bf16.mxu0 0
        %1049 = vmatpush2.bf16.msra.mxu0 0
        %1050 = vmatprep.subr.bf16.mxu0 0
        %1051 = vmatpush2.bf16.msra.mxu0 0
        %1052 = vmatprep.subr.bf16.mxu0 0
        %1053 = vmatpush2.bf16.msra.mxu0 0
        %1054 = vmatprep.subr.bf16.mxu0 0
        %1055 = vmatpush2.bf16.msra.mxu0 0
        %1056 = vmatprep.subr.bf16.mxu0 0
        %1057 = vmatpush2.bf16.msra.mxu0 0
        %1058 = vmatprep.subr.bf16.mxu0 0
        %1059 = vmatpush2.bf16.msra.mxu0 0
        %1060 = vmatprep.subr.bf16.mxu0 0
        %1061 = vmatpush2.bf16.msra.mxu0 0
        %1062 = vmatprep.subr.bf16.mxu0 0
        %1063 = vmatpush2.bf16.msra.mxu0 0
        %1064 = vmatprep.mubr.bf16.mxu0 0
        %1065 = vmatmul.mubr.bf16.gmra.mxu0 %v1018
        %v1066 = vpop.f32.mrf.mxu0
        %v1067 = vadd.f32 0.0, %v1066
        %v1068 = vpop.f32.mrf.mxu0
        %v1069 = vadd.f32 0.0, %v1068
        %v1070 = vpop.f32.mrf.mxu0
        %v1071 = vadd.f32 0.0, %v1070
        %v1072 = vpop.f32.mrf.mxu0
        %v1073 = vadd.f32 0.0, %v1072
        %1074 = vdwg.mxu0
        %1075 = vmatprep.subr.bf16.mxu0 0
        %1076 = vmatpush1.bf16.msra.mxu0 0
        %1077 = vmatprep.subr.bf16.mxu0 %v1030
        %1078 = vmatpush1.bf16.msra.mxu0 %v1027
        %1079 = vmatprep.subr.bf16.mxu0 %v988
        %1080 = vmatpush1.bf16.msra.mxu0 %v987
        %1081 = vmatprep.subr.bf16.mxu0 %v984
        %1082 = vmatpush1.bf16.msra.mxu0 %v983
        %1083 = vmatprep.subr.bf16.mxu0 %v980
        %1084 = vmatpush1.bf16.msra.mxu0 %v979
        %1085 = vmatprep.subr.bf16.mxu0 %v976
        %1086 = vmatpush1.bf16.msra.mxu0 %v975
        %1087 = vmatprep.subr.bf16.mxu0 %v972
        %1088 = vmatpush1.bf16.msra.mxu0 %v971
        %1089 = vmatprep.subr.bf16.mxu0 %v968
        %1090 = vmatpush1.bf16.msra.mxu0 %v967
        %1091 = vmatprep.subr.bf16.mxu0 0
        %1092 = vmatpush2.bf16.msra.mxu0 0
        %1093 = vmatprep.subr.bf16.mxu0 0
        %1094 = vmatpush2.bf16.msra.mxu0 0
        %1095 = vmatprep.subr.bf16.mxu0 0
        %1096 = vmatpush2.bf16.msra.mxu0 0
        %1097 = vmatprep.subr.bf16.mxu0 0
        %1098 = vmatpush2.bf16.msra.mxu0 0
        %1099 = vmatprep.subr.bf16.mxu0 0
        %1100 = vmatpush2.bf16.msra.mxu0 0
        %1101 = vmatprep.subr.bf16.mxu0 0
        %1102 = vmatpush2.bf16.msra.mxu0 0
        %1103 = vmatprep.subr.bf16.mxu0 0
        %1104 = vmatpush2.bf16.msra.mxu0 0
        %1105 = vmatprep.subr.bf16.mxu0 0
        %1106 = vmatpush2.bf16.msra.mxu0 0
        %1107 = vmatprep.mubr.bf16.mxu0 0
        %1108 = vmatmul.mubr.bf16.gmra.mxu0 %v1018
        %v1109 = vpop.f32.mrf.mxu0
        %v1110 = vadd.f32 0.0, %v1109
        %v1111 = vpop.f32.mrf.mxu0
        %v1112 = vadd.f32 0.0, %v1111
        %v1113 = vpop.f32.mrf.mxu0
        %v1114 = vadd.f32 0.0, %v1113
        %v1115 = vpop.f32.mrf.mxu0
        %v1116 = vadd.f32 0.0, %v1115
        %1117 = vdwg.mxu0
        %v1118 = vld [vmem:[#allocation3] sm:$0xff]
        %v1119 = vld [vmem:[#allocation3 + $0x8] sm:$0xff]
        %v1120 = vld [vmem:[#allocation3 + $0x10] sm:$0xff]
        %v1121 = vld [vmem:[#allocation3 + $0x18] sm:$0xff]
        %v1122 = vld [vmem:[#allocation3 + $0x20] sm:$0xff]
        %v1123 = vld [vmem:[#allocation3 + $0x28] sm:$0xff]
        %v1124 = vld [vmem:[#allocation3 + $0x30] sm:$0xff]
        %v1125 = vld [vmem:[#allocation3 + $0x38] sm:$0xff]
        %v1126 = vadd.f32 %v1118, %v1067
        %v1127 = vadd.f32 %v1119, %v1069
        %v1128 = vadd.f32 %v1120, %v1110
        %v1129 = vadd.f32 %v1121, %v1112
        %v1130 = vadd.f32 %v1122, %v1071
        %v1131 = vadd.f32 %v1123, %v1073
        %v1132 = vadd.f32 %v1124, %v1114
        %v1133 = vadd.f32 %v1125, %v1116
        %1134 = vst [vmem:[#allocation3] sm:$0xff] %v1126
        %1135 = vst [vmem:[#allocation3 + $0x8] sm:$0xff] %v1127
        %1136 = vst [vmem:[#allocation3 + $0x10] sm:$0xff] %v1128
        %1137 = vst [vmem:[#allocation3 + $0x18] sm:$0xff] %v1129
        %1138 = vst [vmem:[#allocation3 + $0x20] sm:$0xff] %v1130
        %1139 = vst [vmem:[#allocation3 + $0x28] sm:$0xff] %v1131
        %1140 = vst [vmem:[#allocation3 + $0x30] sm:$0xff] %v1132
        %1141 = vst [vmem:[#allocation3 + $0x38] sm:$0xff] %v1133
        %v1142 = vld [vmem:[#allocation2 + $0x3] sm:$0xff]
        %v1143 = vld [vmem:[#allocation2 + $0xb] sm:$0xff]
        %v1144 = vpack.c.bf16 %v1143, %v1142
        %s1145 = scalar_lea.vmem [#allocation4], 624
        %v1146 = vld [vmem:[%s1145] sm:$0xff]
        %v1147 = vld [vmem:[%s1145 + $0x8] sm:$0xff]
        %v1148 = vld [vmem:[%s1145 + $0x10] sm:$0xff]
        %v1149 = vld [vmem:[%s1145 + $0x18] sm:$0xff]
        %v1150 = vld [vmem:[%s1145 + $0x20] sm:$0xff]
        %v1151 = vld [vmem:[%s1145 + $0x28] sm:$0xff]
        %v1152 = vld [vmem:[%s1145 + $0x30] sm:$0xff]
        %v1153 = vld [vmem:[%s1145 + $0x38] sm:$0xff]
        %v1154 = vld [vmem:[%s1145 + $0x40] sm:$0xff]
        %v1155 = vld [vmem:[%s1145 + $0x48] sm:$0xff]
        %v1156 = vld [vmem:[%s1145 + $0x50] sm:$0xff]
        %v1157 = vld [vmem:[%s1145 + $0x58] sm:$0xff]
        %v1158 = vld [vmem:[%s1145 + $0x60] sm:$0xff]
        %v1159 = vld [vmem:[%s1145 + $0x68] sm:$0xff]
        %v1160 = vld [vmem:[%s1145 + $0x70] sm:$0xff]
        %v1161 = vld [vmem:[%s1145 + $0x78] sm:$0xff]
        %v1162 = vld [vmem:[%s1145 + $0x80] sm:$0xff]
        %v1163 = vld [vmem:[%s1145 + $0x88] sm:$0xff]
        %v1164 = vld [vmem:[%s1145 + $0x90] sm:$0xff]
        %v1165 = vld [vmem:[%s1145 + $0x98] sm:$0xff]
        %v1166 = vld [vmem:[%s1145 + $0xa0] sm:$0xff]
        %v1167 = vld [vmem:[%s1145 + $0xa8] sm:$0xff]
        %v1168 = vld [vmem:[%s1145 + $0xb0] sm:$0xff]
        %v1169 = vld [vmem:[%s1145 + $0xb8] sm:$0xff]
        %v1170 = vld [vmem:[%s1145 + $0xc0] sm:$0x33]
        %v1171 = vld [vmem:[%s1145 + $0xc8] sm:$0x33]
        %v1198 = vunpack.c.l.b16 %v1146
        %v1199 = vunpack.c.h.b16 %v1146
        %v1200 = vunpack.c.l.b16 %v1147
        %v1201 = vunpack.c.h.b16 %v1147
        %v1202 = vunpack.c.l.b16 %v1148
        %v1203 = vunpack.c.h.b16 %v1148
        %v1204 = vunpack.c.l.b16 %v1149
        %v1205 = vunpack.c.h.b16 %v1149
        %v1206 = vunpack.c.l.b16 %v1150
        %v1207 = vunpack.c.h.b16 %v1150
        %v1208 = vunpack.c.l.b16 %v1151
        %v1209 = vunpack.c.h.b16 %v1151
        %v1210 = vunpack.c.l.b16 %v1152
        %v1211 = vunpack.c.h.b16 %v1152
        %v1212 = vunpack.c.l.b16 %v1153
        %v1213 = vunpack.c.h.b16 %v1153
        %v1214 = vunpack.c.l.b16 %v1154
        %v1215 = vunpack.c.h.b16 %v1154
        %v1216 = vunpack.c.l.b16 %v1155
        %v1217 = vunpack.c.h.b16 %v1155
        %v1218 = vunpack.c.l.b16 %v1156
        %v1219 = vunpack.c.h.b16 %v1156
        %v1220 = vunpack.c.l.b16 %v1157
        %v1221 = vunpack.c.h.b16 %v1157
        %v1222 = vunpack.c.l.b16 %v1158
        %v1223 = vunpack.c.h.b16 %v1158
        %v1224 = vunpack.c.l.b16 %v1159
        %v1225 = vunpack.c.h.b16 %v1159
        %v1226 = vunpack.c.l.b16 %v1160
        %v1227 = vunpack.c.h.b16 %v1160
        %v1228 = vunpack.c.l.b16 %v1161
        %v1229 = vunpack.c.h.b16 %v1161
        %v1230 = vunpack.c.l.b16 %v1162
        %v1231 = vunpack.c.h.b16 %v1162
        %v1232 = vunpack.c.l.b16 %v1163
        %v1233 = vunpack.c.h.b16 %v1163
        %v1234 = vunpack.c.l.b16 %v1164
        %v1235 = vunpack.c.h.b16 %v1164
        %v1236 = vunpack.c.l.b16 %v1165
        %v1237 = vunpack.c.h.b16 %v1165
        %v1238 = vunpack.c.l.b16 %v1166
        %v1239 = vunpack.c.h.b16 %v1166
        %v1240 = vunpack.c.l.b16 %v1167
        %v1241 = vunpack.c.h.b16 %v1167
        %v1242 = vunpack.c.l.b16 %v1168
        %v1243 = vunpack.c.h.b16 %v1168
        %v1244 = vunpack.c.l.b16 %v1169
        %v1245 = vunpack.c.h.b16 %v1169
        %v1246 = vunpack.c.l.b16 %v1170
        %v1247 = vunpack.c.h.b16 %v1170
        %v1248 = vunpack.c.l.b16 %v1171
        %v1249 = vunpack.c.h.b16 %v1171
        %v1250 = vpack.c.b16 %v1202, %v1198
        %v1251 = vpack.c.b16 %v1203, %v1199
        %v1252 = vpack.c.b16 %v1204, %v1200
        %v1253 = vpack.c.b16 %v1205, %v1201
        %v1254 = vpack.c.b16 %v1210, %v1206
        %v1255 = vpack.c.b16 %v1211, %v1207
        %v1256 = vpack.c.b16 %v1212, %v1208
        %v1257 = vpack.c.b16 %v1213, %v1209
        %v1258 = vpack.c.b16 %v1218, %v1214
        %v1259 = vpack.c.b16 %v1219, %v1215
        %v1260 = vpack.c.b16 %v1220, %v1216
        %v1261 = vpack.c.b16 %v1221, %v1217
        %v1262 = vpack.c.b16 %v1226, %v1222
        %v1263 = vpack.c.b16 %v1227, %v1223
        %v1264 = vpack.c.b16 %v1228, %v1224
        %v1265 = vpack.c.b16 %v1229, %v1225
        %v1266 = vpack.c.b16 %v1234, %v1230
        %v1267 = vpack.c.b16 %v1235, %v1231
        %v1268 = vpack.c.b16 %v1236, %v1232
        %v1269 = vpack.c.b16 %v1237, %v1233
        %v1270 = vpack.c.b16 %v1242, %v1238
        %v1271 = vpack.c.b16 %v1243, %v1239
        %v1272 = vpack.c.b16 %v1244, %v1240
        %v1273 = vpack.c.b16 %v1245, %v1241
        %v1274 = vpack.c.b16 %v1246, %v1246
        %v1275 = vpack.c.b16 %v1247, %v1247
        %v1276 = vpack.c.b16 %v1248, %v1248
        %v1277 = vpack.c.b16 %v1249, %v1249
        %v1303 = vsel %vm297, %v1144, 0
        %v1306 = vsel %vm465, %v1274, 0
        %v1309 = vsel %vm465, %v1275, 0
        %v1312 = vsel %vm465, %v1276, 0
        %v1315 = vsel %vm465, %v1277, 0
        %1317 = vmatprep.subr.bf16.mxu0 0
        %1318 = vmatpush1.bf16.msra.mxu0 0
        %1319 = vmatprep.subr.bf16.mxu0 %v1309
        %1320 = vmatpush1.bf16.msra.mxu0 %v1306
        %1321 = vmatprep.subr.bf16.mxu0 %v1271
        %1322 = vmatpush1.bf16.msra.mxu0 %v1270
        %1323 = vmatprep.subr.bf16.mxu0 %v1267
        %1324 = vmatpush1.bf16.msra.mxu0 %v1266
        %1325 = vmatprep.subr.bf16.mxu0 %v1263
        %1326 = vmatpush1.bf16.msra.mxu0 %v1262
        %1327 = vmatprep.subr.bf16.mxu0 %v1259
        %1328 = vmatpush1.bf16.msra.mxu0 %v1258
        %1329 = vmatprep.subr.bf16.mxu0 %v1255
        %1330 = vmatpush1.bf16.msra.mxu0 %v1254
        %1331 = vmatprep.subr.bf16.mxu0 %v1251
        %1332 = vmatpush1.bf16.msra.mxu0 %v1250
        %1333 = vmatprep.subr.bf16.mxu0 0
        %1334 = vmatpush2.bf16.msra.mxu0 0
        %1335 = vmatprep.subr.bf16.mxu0 0
        %1336 = vmatpush2.bf16.msra.mxu0 0
        %1337 = vmatprep.subr.bf16.mxu0 0
        %1338 = vmatpush2.bf16.msra.mxu0 0
        %1339 = vmatprep.subr.bf16.mxu0 0
        %1340 = vmatpush2.bf16.msra.mxu0 0
        %1341 = vmatprep.subr.bf16.mxu0 0
        %1342 = vmatpush2.bf16.msra.mxu0 0
        %1343 = vmatprep.subr.bf16.mxu0 0
        %1344 = vmatpush2.bf16.msra.mxu0 0
        %1345 = vmatprep.subr.bf16.mxu0 0
        %1346 = vmatpush2.bf16.msra.mxu0 0
        %1347 = vmatprep.subr.bf16.mxu0 0
        %1348 = vmatpush2.bf16.msra.mxu0 0
        %1349 = vmatprep.mubr.bf16.mxu0 0
        %1350 = vmatmul.mubr.bf16.gmra.mxu0 %v1303
        %v1351 = vpop.f32.mrf.mxu0
        %v1352 = vadd.f32 0.0, %v1351
        %v1353 = vpop.f32.mrf.mxu0
        %v1354 = vadd.f32 0.0, %v1353
        %v1355 = vpop.f32.mrf.mxu0
        %v1356 = vadd.f32 0.0, %v1355
        %v1357 = vpop.f32.mrf.mxu0
        %v1358 = vadd.f32 0.0, %v1357
        %1359 = vdwg.mxu0
        %1360 = vmatprep.subr.bf16.mxu0 0
        %1361 = vmatpush1.bf16.msra.mxu0 0
        %1362 = vmatprep.subr.bf16.mxu0 %v1315
        %1363 = vmatpush1.bf16.msra.mxu0 %v1312
        %1364 = vmatprep.subr.bf16.mxu0 %v1273
        %1365 = vmatpush1.bf16.msra.mxu0 %v1272
        %1366 = vmatprep.subr.bf16.mxu0 %v1269
        %1367 = vmatpush1.bf16.msra.mxu0 %v1268
        %1368 = vmatprep.subr.bf16.mxu0 %v1265
        %1369 = vmatpush1.bf16.msra.mxu0 %v1264
        %1370 = vmatprep.subr.bf16.mxu0 %v1261
        %1371 = vmatpush1.bf16.msra.mxu0 %v1260
        %1372 = vmatprep.subr.bf16.mxu0 %v1257
        %1373 = vmatpush1.bf16.msra.mxu0 %v1256
        %1374 = vmatprep.subr.bf16.mxu0 %v1253
        %1375 = vmatpush1.bf16.msra.mxu0 %v1252
        %1376 = vmatprep.subr.bf16.mxu0 0
        %1377 = vmatpush2.bf16.msra.mxu0 0
        %1378 = vmatprep.subr.bf16.mxu0 0
        %1379 = vmatpush2.bf16.msra.mxu0 0
        %1380 = vmatprep.subr.bf16.mxu0 0
        %1381 = vmatpush2.bf16.msra.mxu0 0
        %1382 = vmatprep.subr.bf16.mxu0 0
        %1383 = vmatpush2.bf16.msra.mxu0 0
        %1384 = vmatprep.subr.bf16.mxu0 0
        %1385 = vmatpush2.bf16.msra.mxu0 0
        %1386 = vmatprep.subr.bf16.mxu0 0
        %1387 = vmatpush2.bf16.msra.mxu0 0
        %1388 = vmatprep.subr.bf16.mxu0 0
        %1389 = vmatpush2.bf16.msra.mxu0 0
        %1390 = vmatprep.subr.bf16.mxu0 0
        %1391 = vmatpush2.bf16.msra.mxu0 0
        %1392 = vmatprep.mubr.bf16.mxu0 0
        %1393 = vmatmul.mubr.bf16.gmra.mxu0 %v1303
        %v1394 = vpop.f32.mrf.mxu0
        %v1395 = vadd.f32 0.0, %v1394
        %v1396 = vpop.f32.mrf.mxu0
        %v1397 = vadd.f32 0.0, %v1396
        %v1398 = vpop.f32.mrf.mxu0
        %v1399 = vadd.f32 0.0, %v1398
        %v1400 = vpop.f32.mrf.mxu0
        %v1401 = vadd.f32 0.0, %v1400
        %1402 = vdwg.mxu0
        %v1403 = vld [vmem:[#allocation3] sm:$0xff]
        %v1404 = vld [vmem:[#allocation3 + $0x8] sm:$0xff]
        %v1405 = vld [vmem:[#allocation3 + $0x10] sm:$0xff]
        %v1406 = vld [vmem:[#allocation3 + $0x18] sm:$0xff]
        %v1407 = vld [vmem:[#allocation3 + $0x20] sm:$0xff]
        %v1408 = vld [vmem:[#allocation3 + $0x28] sm:$0xff]
        %v1409 = vld [vmem:[#allocation3 + $0x30] sm:$0xff]
        %v1410 = vld [vmem:[#allocation3 + $0x38] sm:$0xff]
        %v1411 = vadd.f32 %v1403, %v1352
        %v1412 = vadd.f32 %v1404, %v1354
        %v1413 = vadd.f32 %v1405, %v1395
        %v1414 = vadd.f32 %v1406, %v1397
        %v1415 = vadd.f32 %v1407, %v1356
        %v1416 = vadd.f32 %v1408, %v1358
        %v1417 = vadd.f32 %v1409, %v1399
        %v1418 = vadd.f32 %v1410, %v1401
        %1419 = vst [vmem:[#allocation3] sm:$0xff] %v1411
        %1420 = vst [vmem:[#allocation3 + $0x8] sm:$0xff] %v1412
        %1421 = vst [vmem:[#allocation3 + $0x10] sm:$0xff] %v1413
        %1422 = vst [vmem:[#allocation3 + $0x18] sm:$0xff] %v1414
        %1423 = vst [vmem:[#allocation3 + $0x20] sm:$0xff] %v1415
        %1424 = vst [vmem:[#allocation3 + $0x28] sm:$0xff] %v1416
        %1425 = vst [vmem:[#allocation3 + $0x30] sm:$0xff] %v1417
        %1426 = vst [vmem:[#allocation3 + $0x38] sm:$0xff] %v1418
        %v1427 = vld [vmem:[#allocation3] sm:$0xff]
        %v1428 = vld [vmem:[#allocation3 + $0x8] sm:$0xff]
        %v1429 = vld [vmem:[#allocation3 + $0x20] sm:$0xff]
        %v1430 = vld [vmem:[#allocation3 + $0x28] sm:$0xff]
        %1431 = vst [vmem:[%s290] sm:$0xff] %v1427
        %1432 = vst [vmem:[%s290 + $0x8] sm:$0xff] %v1428
        %1433 = vst [vmem:[%s290 + $0x10] sm:$0xff] %v1429
        %1434 = vst [vmem:[%s290 + $0x18] sm:$0xff] %v1430
        %v1435 = vld [vmem:[#allocation3 + $0x10] sm:$0xff]
        %v1436 = vld [vmem:[#allocation3 + $0x18] sm:$0xff]
        %v1437 = vld [vmem:[#allocation3 + $0x30] sm:$0xff]
        %v1438 = vld [vmem:[#allocation3 + $0x38] sm:$0xff]
        %s1439 = scalar_lea.vmem %s290, 32
        %1440 = vst [vmem:[%s1439] sm:$0xff] %v1435
        %1441 = vst [vmem:[%s1439 + $0x8] sm:$0xff] %v1436
        %1442 = vst [vmem:[%s1439 + $0x10] sm:$0xff] %v1437
        %1443 = vst [vmem:[%s1439 + $0x18] sm:$0xff] %v1438
        %s1444 = smul.u32 2, %s20
        %p1445 = scmp.lt.s32.totalorder %s19, 1
        %s1446 = scalar_select %p1445, %s19, 1
        %p1447 = scmp.lt.s32.totalorder %s1444, 1
        %s1448 = scalar_select %p1447, %s1444, 1
        %s1449 = smul.addr %s1448, 2
        %s1450 = smul.addr %s1446, 8
        %s1451 = sadd.s32 %s1449, %s1450
        %s1452 = smul.addr %s1451, 8
        %s1453 = scalar_lea.vmem %s3, %s1452
        // Predicated region
        $region37: #{stft_forward.1} parent=31 // pred_check
          %p1454 = pneg %p128
        $region38: #{stft_forward.1} parent=31 // pred_check_branch
          %1456 = sbr.rel (%p1454) target = $region40
        $region39: #{stft_forward.1} parent=31 // pred_region
          %s1457 = smul.u32 2, %s20
        $region40: #{stft_forward.1} parent=31 // pred_fallthru
          _
      $region32: #{stft_forward.1} parent=5 // pred_fallthru
        _
      %p1458 = scmp.le.s32.totalorder 2, %s10
      // Predicated region
      $region41: #{stft_forward.1} parent=5 // pred_check
        %p1459 = pneg %p1458
      $region42: #{stft_forward.1} parent=5 // pred_check_branch
        %1461 = sbr.rel (%p1459) target = $region44
      $region43: #{stft_forward.1} parent=5 // pred_region
        %s1462 = ssub.s32 %s10, 2
        // Predicated region
        $region45: #{stft_forward.1} parent=43 // pred_check
          %p1463 = pneg %p134
        $region46: #{stft_forward.1} parent=43 // pred_check_branch
          %1465 = sbr.rel (%p1463) target = $region48
        $region47: #{stft_forward.1} parent=43 // pred_region
          %s1466 = smul.u32 2, %s22
          %p1467 = scmp.lt.s32.totalorder %s21, 1
          %s1468 = scalar_select %p1467, %s21, 1
          %p1469 = scmp.lt.s32.totalorder %s1466, 1
          %s1470 = scalar_select %p1469, %s1466, 1
          %s1471 = smul.addr %s1470, 2
          %s1472 = smul.addr %s1468, 8
          %s1473 = sadd.s32 %s1471, %s1472
          %s1474 = smul.addr %s1473, 8
          %s1475 = scalar_lea.vmem %s3, %s1474
        $region48: #{stft_forward.1} parent=43 // pred_fallthru
          _
      $region44: #{stft_forward.1} parent=5 // pred_fallthru
        _
    $region6: #{stft_forward.1} parent=1 // loop_footer
      %s14 = sadd.s32 1, %s10
    $region7: #{stft_forward.1} parent=1 // loop_footer_branch
      %9 = sbr.rel target = $region3
    $region8: #{stft_forward.1} parent=1 // loop_exit
      _
    %1476 = vsyncpa [#allocation5], 1
    %s1477 = scalar_lea.sflag [#allocation5], 1
    %1478 = vsyncpa %s1477, 1

</llo_original>
